<compile_context>
chip_gen: v6e
topology: v6e:2x2x1
jax: 0.10.0
libtpu: 0.0.40
codegen_flags: <defaults>
</compile_context>

<pallas_src>
import numpy as np
import jax
import jax.numpy as jnp
from jax.experimental import pallas as pl
from jax.experimental.pallas import tpu as pltpu

# ---- small, module-consistent sizes -------------------------------------
N_OBJ = 1        # n
R     = 16       # reso (small for the demo; real module default is 256)
C     = 32       # channel
RR    = R * R
M     = 256      # number of query points
NPACK = 4        # 4 * C == 128 -> lane-dense output slab

assert NPACK * C == 128


def _choose_tm(m_pts):
    """Points per grid step.  v7x has 2 TensorCores -> keep >=2 parallel grid
    steps; single-TC v5e/v6e -> fold to one step (fewer per-step overheads)."""
    try:
        kind = jax.devices()[0].device_kind.lower()
    except Exception:
        kind = ""
    tm = 128 if "v7" in kind else 256
    tm = min(tm, m_pts)
    assert m_pts % tm == 0 and tm % NPACK == 0 and (tm // NPACK) % 8 == 0
    return tm


# ---- Pallas kernel: separable-hat bilinear weights -> MXU gather -> 3-plane product
def triplane_kernel(xyz_ref, tri_ref, o_ref):
    # xyz_ref: (TM, 3) f32, tri_ref: (3, RR, C) bf16, o_ref: (TM//NPACK, NPACK*C) f32
    ch = o_ref.shape[0]                     # TM // NPACK

    pts = xyz_ref[...]                      # single load, slice in registers
    half = 0.5 * (R - 1)                    # align_corners=True unnormalization
    px = (pts[:, 0:1] + 1.0) * half         # (TM, 1) pixel coord fed by x
    py = (pts[:, 1:2] + 1.0) * half         #                      fed by y
    pz = (pts[:, 2:3] + 1.0) * half         #                      fed by z

    # Lane -> (row, col) maps of the flattened H*W axis; tiny (1, RR) broadcasts.
    lanes = jax.lax.broadcasted_iota(jnp.int32, (1, RR), 1)
    if (R & (R - 1)) == 0:                  # R power of two: shift/mask
        shift = R.bit_length() - 1
        rowmap = (lanes >> shift).astype(jnp.float32)
        colmap = (lanes & (R - 1)).astype(jnp.float32)
    else:
        rowmap = (lanes // R).astype(jnp.float32)
        colmap = (lanes % R).astype(jnp.float32)

    def hat(p, posmap):
        # Separable bilinear "hat" weight.  Un-renormalized by construction, so
        # out-of-bounds corners contribute 0 -> exact grid_sample zeros padding.
        return jnp.maximum(1.0 - jnp.abs(p - posmap), 0.0)   # (TM, RR) f32

    def sample(acc_f32, plane_bf16):
        # Cast the weight matrix to bf16 only at the dot: native bf16xbf16->f32 MXU.
        return jnp.dot(acc_f32.astype(jnp.bfloat16), plane_bf16,
                       preferred_element_type=jnp.float32)   # (TM, C) f32

    # Shared per-coordinate factors:
    #   plane 0: (grid_x, grid_y) = (y, x) -> col from y, row from x
    #   plane 1: (grid_x, grid_y) = (z, x) -> col from z, row from x
    #   plane 2: (grid_x, grid_y) = (y, z) -> col from y, row from z
    row_x = hat(px, rowmap)
    col_y = hat(py, colmap)
    f0 = sample(row_x * col_y, tri_ref[0])
    f1 = sample(row_x * hat(pz, colmap), tri_ref[1])          # row_x dead after this
    f2 = sample(hat(pz, rowmap) * col_y, tri_ref[2])
    f = f0 * f1 * f2                                           # (TM, C) f32

    # Lane-dense store: pack NPACK row-chunks side by side -> (TM//NPACK, NPACK*C)
    o_ref[...] = jnp.concatenate(
        [f[j * ch:(j + 1) * ch, :] for j in range(NPACK)], axis=1)


# ---- one-time parameter pre-pack (NOT on the per-call forward path) -----
def prepack_triplane(triplane):
    """(n, 3, C, R, R) f32 NCHW  ->  (n, 3, R*R, C) bf16, flat index = h*R + w."""
    n = triplane.shape[0]
    flat = jnp.transpose(triplane, (0, 1, 3, 4, 2)).reshape(n, 3, RR, C)
    return flat.astype(jnp.bfloat16)


def triplane_forward(oid, xyz, triplane_packed):
    """xyz: (1, M, 3) f32, triplane_packed: (n, 3, R*R, C) bf16 -> (1, M, C) f32."""
    m_pts = xyz.shape[1]
    tm = _choose_tm(m_pts)
    ch = tm // NPACK
    pts = xyz[0]                                    # (M, 3)
    plane_flat = triplane_packed[oid]               # (3, R*R, C) bf16

    grid_m = m_pts // tm
    flops = 2 * 3 * m_pts * RR * C
    bytes_accessed = int(plane_flat.size * 2 + pts.size * 4 + m_pts * C * 4)

    out_packed = pl.pallas_call(
        triplane_kernel,
        out_shape=jax.ShapeDtypeStruct((m_pts // NPACK, NPACK * C), jnp.float32),
        grid_spec=pltpu.PrefetchScalarGridSpec(
            num_scalar_prefetch=0,
            grid=(grid_m,),
            in_specs=[
                pl.BlockSpec((tm, 3), lambda i: (i, 0)),
                # Grid-invariant plane block (96 KiB bf16 at R=16, so the default
                # double buffer is harmless).  At the real R=256 keep this in HBM
                # (memory_space=pl.ANY + manual DMA) or single-buffer it instead.
                pl.BlockSpec((3, RR, C), lambda i: (0, 0, 0)),
            ],
            out_specs=pl.BlockSpec((ch, NPACK * C), lambda i: (i, 0)),
        ),
        compiler_params=pltpu.CompilerParams(
            dimension_semantics=("parallel",)),
        cost_estimate=pl.CostEstimate(
            flops=flops, transcendentals=0, bytes_accessed=bytes_accessed),
    )(pts, plane_flat)

    # Un-pack the lane-dense slab: metadata/layout plumbing only.
    out = out_packed.reshape(m_pts // tm, ch, NPACK, C)
    out = jnp.transpose(out, (0, 2, 1, 3)).reshape(m_pts, C)
    return out[None]                                # (1, M, C)


# ---- deterministic geo_init of the triplane parameter (plain-JAX glue) ----
def softplus_beta100(h):
    return jnp.where(100.0 * h > 20.0, h, jnp.log1p(jnp.exp(100.0 * h)) / 100.0)


def build_triplane_param(key):
    k1, k2 = jax.random.split(key)
    std = np.sqrt(2.0) / np.sqrt(C)
    W1 = std * jax.random.normal(k1, (C, 3), jnp.float32)
    b1 = jnp.zeros((C,), jnp.float32)
    W2 = std * jax.random.normal(k2, (C, C), jnp.float32)
    b2 = jnp.zeros((C,), jnp.float32)

    def sdf_proxy(p):  # (N, 3) -> (N, C)
        h = p @ W1.T + b1
        h = softplus_beta100(h)
        return h @ W2.T + b2

    X = jnp.linspace(-1.0, 1.0, R)
    U, V = jnp.meshgrid(X, X, indexing="ij")
    Zg = jnp.zeros((R, R), jnp.float32)
    inputx = jnp.stack([Zg, U, V], -1).reshape(-1, 3)
    inputy = jnp.stack([U, Zg, V], -1).reshape(-1, 3)
    inputz = jnp.stack([U, V, Zg], -1).reshape(-1, 3)

    planes = []
    for inp in (inputx, inputy, inputz):
        planes.append(sdf_proxy(inp).T.reshape(C, R, R))
    ini = jnp.stack(planes, 0)                              # (3, C, R, R)
    return jnp.tile(ini[None], (N_OBJ, 1, 1, 1, 1)) / 3.0   # (n, 3, C, R, R)


# ---- pure-JAX reference (grid_sample + product) for a correctness check ----
def reference_forward(oid, xyz, triplane):
    # The kernel consumes a bf16 copy of the plane, so round here too.  The
    # bilinear weights and all accumulation stay f32 in this reference; the kernel
    # additionally rounds the corner weights to bf16 for the MXU (<=2^-9 relative).
    plane = triplane[oid].astype(jnp.bfloat16).astype(jnp.float32)   # (3, C, R, R)
    pts = xyz[0]
    x, y, z = pts[:, 0], pts[:, 1], pts[:, 2]
    coords = [(y, x), (z, x), (y, z)]
    feats = []
    for p, (u, v) in enumerate(coords):
        ix = (u + 1.0) * 0.5 * (R - 1)
        iy = (v + 1.0) * 0.5 * (R - 1)
        ix0 = jnp.floor(ix)
        iy0 = jnp.floor(iy)
        f = jnp.zeros((pts.shape[0], C), jnp.float32)
        for dx in (0.0, 1.0):
            for dy in (0.0, 1.0):
                cx = ix0 + dx
                cy = iy0 + dy
                wx = 1.0 - jnp.abs(ix - cx)
                wy = 1.0 - jnp.abs(iy - cy)
                inb = (cx >= 0) & (cx <= R - 1) & (cy >= 0) & (cy <= R - 1)
                cxi = jnp.clip(cx, 0, R - 1).astype(jnp.int32)
                cyi = jnp.clip(cy, 0, R - 1).astype(jnp.int32)
                val = plane[p, :, cyi, cxi]                 # (M, C) (adv. idx dims first)
                w = jnp.where(inb, wx * wy, 0.0)            # (M,)
                f = f + val * w[:, None]
        feats.append(f)
    return (feats[0] * feats[1] * feats[2])[None]


if __name__ == "__main__":
    key = jax.random.PRNGKey(0)
    kparam, kxyz = jax.random.split(key)

    triplane = build_triplane_param(kparam)                 # (1, 3, C, R, R) f32
    triplane_packed = prepack_triplane(triplane)            # (1, 3, R*R, C) bf16
    xyz = jax.random.uniform(kxyz, (1, M, 3), jnp.float32, minval=-1.0, maxval=1.0)
    oid = 0

    out = jax.block_until_ready(triplane_forward(oid, xyz, triplane_packed))
    ref = jax.block_until_ready(reference_forward(oid, xyz, triplane))

    assert out.shape == (1, M, C)

    out_np = np.asarray(out, dtype=np.float64)
    ref_np = np.asarray(ref, dtype=np.float64)
    scale = float(np.max(np.abs(ref_np)))
    max_err = float(np.max(np.abs(out_np - ref_np)))
    # Scale-relative check: remaining deltas vs the f32-weight reference come only
    # from the one bf16 rounding of the corner weights at the MXU (<=2^-9 relative
    # per weight, ~0.6% worst-case on the triple product); any semantic bug (wrong
    # plane pairing, hat formulation, or layout) would produce O(scale) errors.
    assert max_err <= 2e-2 * scale + 1e-7, f"max_err={max_err:.3e} scale={scale:.3e}"

    print("KERNEL_OK")
</pallas_src>

<mosaic_0001>
module attributes {stable_mosaic.version = 11 : i64} {
  func.func @triplane_kernel(%arg0: i32, %arg1: memref<256x3xf32, #tpu.memory_space<vmem>>, %arg2: memref<3x256x32xbf16, #tpu.memory_space<vmem>>, %arg3: memref<64x128xf32, #tpu.memory_space<vmem>>) attributes {dimension_semantics = [#tpu.dimension_semantics<parallel>], iteration_bounds = array<i64: 1>, scalar_prefetch = 0 : i64, scratch_operands = 0 : i64, tpu.core_type = #tpu.core_type<tc>, window_params = [{transform_indices = @transform_0, window_bounds = array<i64: 256, 3>}, {pipeline_mode = #tpu.pipeline_mode<synchronous>, transform_indices = @transform_1, window_bounds = array<i64: 3, 256, 32>}, {transform_indices = @transform_2, window_bounds = array<i64: 64, 128>}]} {
    %c0 = arith.constant 0 : index
    %c0_0 = arith.constant 0 : index
    %0 = vector.load %arg1[%c0, %c0_0] : memref<256x3xf32, #tpu.memory_space<vmem>>, vector<256x3xf32>
    %1 = vector.extract_strided_slice %0 {offsets = [0, 0], sizes = [256, 1], strides = [1, 1]} : vector<256x3xf32> to vector<256x1xf32>
    %cst = arith.constant 1.000000e+00 : f32
    %2 = vector.broadcast %cst : f32 to vector<256x1xf32>
    %3 = arith.addf %1, %2 : vector<256x1xf32>
    %cst_1 = arith.constant 7.500000e+00 : f32
    %4 = vector.broadcast %cst_1 : f32 to vector<256x1xf32>
    %5 = arith.mulf %3, %4 : vector<256x1xf32>
    %6 = vector.extract_strided_slice %0 {offsets = [0, 1], sizes = [256, 1], strides = [1, 1]} : vector<256x3xf32> to vector<256x1xf32>
    %cst_2 = arith.constant 1.000000e+00 : f32
    %7 = vector.broadcast %cst_2 : f32 to vector<256x1xf32>
    %8 = arith.addf %6, %7 : vector<256x1xf32>
    %cst_3 = arith.constant 7.500000e+00 : f32
    %9 = vector.broadcast %cst_3 : f32 to vector<256x1xf32>
    %10 = arith.mulf %8, %9 : vector<256x1xf32>
    %11 = vector.extract_strided_slice %0 {offsets = [0, 2], sizes = [256, 1], strides = [1, 1]} : vector<256x3xf32> to vector<256x1xf32>
    %cst_4 = arith.constant 1.000000e+00 : f32
    %12 = vector.broadcast %cst_4 : f32 to vector<256x1xf32>
    %13 = arith.addf %11, %12 : vector<256x1xf32>
    %cst_5 = arith.constant 7.500000e+00 : f32
    %14 = vector.broadcast %cst_5 : f32 to vector<256x1xf32>
    %15 = arith.mulf %13, %14 : vector<256x1xf32>
    %16 = tpu.iota {dimensions = array<i32: 1>} : vector<1x256xi32>
    %c4_i32 = arith.constant 4 : i32
    %17 = vector.broadcast %c4_i32 : i32 to vector<1x256xi32>
    %18 = arith.shrsi %16, %17 : vector<1x256xi32>
    %19 = arith.sitofp %18 : vector<1x256xi32> to vector<1x256xf32>
    %c15_i32 = arith.constant 15 : i32
    %20 = vector.broadcast %c15_i32 : i32 to vector<1x256xi32>
    %21 = arith.andi %16, %20 : vector<1x256xi32>
    %22 = arith.sitofp %21 : vector<1x256xi32> to vector<1x256xf32>
    %23 = vector.broadcast %5 : vector<256x1xf32> to vector<256x256xf32>
    %24 = vector.broadcast %19 : vector<1x256xf32> to vector<256x256xf32>
    %25 = arith.subf %23, %24 : vector<256x256xf32>
    %26 = math.absf %25 : vector<256x256xf32>
    %cst_6 = arith.constant 1.000000e+00 : f32
    %27 = vector.broadcast %cst_6 : f32 to vector<256x256xf32>
    %28 = arith.subf %27, %26 : vector<256x256xf32>
    %cst_7 = arith.constant 0.000000e+00 : f32
    %29 = vector.broadcast %cst_7 : f32 to vector<256x256xf32>
    %30 = arith.maximumf %28, %29 : vector<256x256xf32>
    %31 = vector.broadcast %10 : vector<256x1xf32> to vector<256x256xf32>
    %32 = vector.broadcast %22 : vector<1x256xf32> to vector<256x256xf32>
    %33 = arith.subf %31, %32 : vector<256x256xf32>
    %34 = math.absf %33 : vector<256x256xf32>
    %cst_8 = arith.constant 1.000000e+00 : f32
    %35 = vector.broadcast %cst_8 : f32 to vector<256x256xf32>
    %36 = arith.subf %35, %34 : vector<256x256xf32>
    %cst_9 = arith.constant 0.000000e+00 : f32
    %37 = vector.broadcast %cst_9 : f32 to vector<256x256xf32>
    %38 = arith.maximumf %36, %37 : vector<256x256xf32>
    %39 = arith.mulf %30, %38 : vector<256x256xf32>
    %c0_10 = arith.constant 0 : index
    %c0_11 = arith.constant 0 : index
    %c0_12 = arith.constant 0 : index
    %40 = vector.load %arg2[%c0_10, %c0_11, %c0_12] : memref<3x256x32xbf16, #tpu.memory_space<vmem>>, vector<1x256x32xbf16>
    %41 = vector.shape_cast %40 : vector<1x256x32xbf16> to vector<256x32xbf16>
    %42 = arith.truncf %39 : vector<256x256xf32> to vector<256x256xbf16>
    %cst_13 = arith.constant dense<0.000000e+00> : vector<256x32xf32>
    %43 = tpu.matmul %42, %41, %cst_13 {dimension_numbers = #tpu.dot_dimension_numbers<[1], [0], [0], [1], [0, 0, 1, 1], [], []>} : vector<256x256xbf16>, vector<256x32xbf16>, vector<256x32xf32> -> vector<256x32xf32>
    %44 = vector.broadcast %15 : vector<256x1xf32> to vector<256x256xf32>
    %45 = vector.broadcast %22 : vector<1x256xf32> to vector<256x256xf32>
    %46 = arith.subf %44, %45 : vector<256x256xf32>
    %47 = math.absf %46 : vector<256x256xf32>
    %cst_14 = arith.constant 1.000000e+00 : f32
    %48 = vector.broadcast %cst_14 : f32 to vector<256x256xf32>
    %49 = arith.subf %48, %47 : vector<256x256xf32>
    %cst_15 = arith.constant 0.000000e+00 : f32
    %50 = vector.broadcast %cst_15 : f32 to vector<256x256xf32>
    %51 = arith.maximumf %49, %50 : vector<256x256xf32>
    %52 = arith.mulf %30, %51 : vector<256x256xf32>
    %c1 = arith.constant 1 : index
    %c0_16 = arith.constant 0 : index
    %c0_17 = arith.constant 0 : index
    %53 = vector.load %arg2[%c1, %c0_16, %c0_17] : memref<3x256x32xbf16, #tpu.memory_space<vmem>>, vector<1x256x32xbf16>
    %54 = vector.shape_cast %53 : vector<1x256x32xbf16> to vector<256x32xbf16>
    %55 = arith.truncf %52 : vector<256x256xf32> to vector<256x256xbf16>
    %cst_18 = arith.constant dense<0.000000e+00> : vector<256x32xf32>
    %56 = tpu.matmul %55, %54, %cst_18 {dimension_numbers = #tpu.dot_dimension_numbers<[1], [0], [0], [1], [0, 0, 1, 1], [], []>} : vector<256x256xbf16>, vector<256x32xbf16>, vector<256x32xf32> -> vector<256x32xf32>
    %57 = vector.broadcast %15 : vector<256x1xf32> to vector<256x256xf32>
    %58 = vector.broadcast %19 : vector<1x256xf32> to vector<256x256xf32>
    %59 = arith.subf %57, %58 : vector<256x256xf32>
    %60 = math.absf %59 : vector<256x256xf32>
    %cst_19 = arith.constant 1.000000e+00 : f32
    %61 = vector.broadcast %cst_19 : f32 to vector<256x256xf32>
    %62 = arith.subf %61, %60 : vector<256x256xf32>
    %cst_20 = arith.constant 0.000000e+00 : f32
    %63 = vector.broadcast %cst_20 : f32 to vector<256x256xf32>
    %64 = arith.maximumf %62, %63 : vector<256x256xf32>
    %65 = arith.mulf %64, %38 : vector<256x256xf32>
    %c2 = arith.constant 2 : index
    %c0_21 = arith.constant 0 : index
    %c0_22 = arith.constant 0 : index
    %66 = vector.load %arg2[%c2, %c0_21, %c0_22] : memref<3x256x32xbf16, #tpu.memory_space<vmem>>, vector<1x256x32xbf16>
    %67 = vector.shape_cast %66 : vector<1x256x32xbf16> to vector<256x32xbf16>
    %68 = arith.truncf %65 : vector<256x256xf32> to vector<256x256xbf16>
    %cst_23 = arith.constant dense<0.000000e+00> : vector<256x32xf32>
    %69 = tpu.matmul %68, %67, %cst_23 {dimension_numbers = #tpu.dot_dimension_numbers<[1], [0], [0], [1], [0, 0, 1, 1], [], []>} : vector<256x256xbf16>, vector<256x32xbf16>, vector<256x32xf32> -> vector<256x32xf32>
    %70 = arith.mulf %43, %56 : vector<256x32xf32>
    %71 = arith.mulf %70, %69 : vector<256x32xf32>
    %72 = vector.extract_strided_slice %71 {offsets = [0, 0], sizes = [64, 32], strides = [1, 1]} : vector<256x32xf32> to vector<64x32xf32>
    %73 = vector.extract_strided_slice %71 {offsets = [64, 0], sizes = [64, 32], strides = [1, 1]} : vector<256x32xf32> to vector<64x32xf32>
    %74 = vector.extract_strided_slice %71 {offsets = [128, 0], sizes = [64, 32], strides = [1, 1]} : vector<256x32xf32> to vector<64x32xf32>
    %75 = vector.extract_strided_slice %71 {offsets = [192, 0], sizes = [64, 32], strides = [1, 1]} : vector<256x32xf32> to vector<64x32xf32>
    %76 = tpu.concatenate %72, %73, %74, %75 in 1 : vector<64x32xf32>, vector<64x32xf32>, vector<64x32xf32>, vector<64x32xf32> -> vector<64x128xf32>
    %c0_24 = arith.constant 0 : index
    %c0_25 = arith.constant 0 : index
    %77 = vector.load %arg3[%c0_24, %c0_25] : memref<64x128xf32, #tpu.memory_space<vmem>>, vector<64x128xf32>
    tpu.vector_store %arg3[%c0_24, %c0_25], %76 {strides = array<i32>} : memref<64x128xf32, #tpu.memory_space<vmem>>, vector<64x128xf32>,
    return
  }
  func.func @transform_0(%arg0: i32) -> (i32, i32) {
    %c0_i32 = arith.constant 0 : i32
    %c0_i32_0 = arith.constant 0 : i32
    return %arg0, %c0_i32 : i32, i32
  }
  func.func @transform_1(%arg0: i32) -> (i32, i32, i32) {
    %c0_i32 = arith.constant 0 : i32
    %c0_i32_0 = arith.constant 0 : i32
    %c0_i32_1 = arith.constant 0 : i32
    %c0_i32_2 = arith.constant 0 : i32
    return %c0_i32, %c0_i32_0, %c0_i32_1 : i32, i32, i32
  }
  func.func @transform_2(%arg0: i32) -> (i32, i32) {
    %c0_i32 = arith.constant 0 : i32
    %c0_i32_0 = arith.constant 0 : i32
    return %arg0, %c0_i32 : i32, i32
  }
}

</mosaic_0001>

<llo_original>
// kernel: tpu_custom_call.1
$region0: #{tpu_custom_call.1}
  #allocation0 [shape = 'u32[]', space=smem, size = 0x4, offset = 0x4, fixed_abs, tag = 'smem constant byte address 0x4 - core index']
  #allocation1 [shape = 'u32[144,128]{1,0:T(1,128)}', space=vmem, size = 0x12000, scoped, tag = 'internal scratch']
  %s0 = inlined_call_operand.vmem [shape: f32[256,3], index: 0, kind: input, shape index: {}]
  %s1 = inlined_call_operand.vmem [shape: bf16[3,256,32], index: 1, kind: input, shape index: {}]
  %s2 = inlined_call_operand.hbm [shape: f32[64,128], index: 2, kind: output, shape index: {}]
  %s3 = sld [smem:[#allocation0]]
  $region18: #{tpu_custom_call.1} parent=0
    _
  %s5 = ssub.s32 1, %s3
  %s6 = scalar_select 0, %s5, %s3
  $region1: #{tpu_custom_call.1} parent=0
    #allocation2 [shape = 'u8[32768]{0}', space=vmem, size = 0x8000, scoped, tag = 'output window, operand 0, single buffered']
    #allocation3 [shape = 's32[1]{0}', space=sflag, size = 0x4, scoped, tag = 'scoped memory for tpu_custom_call.1']
    %7 = vsyncpa [#allocation3], 0
    // Predicated region
    $region2: #{tpu_custom_call.1} parent=1 // pred_check
      _
    $region3: #{tpu_custom_call.1} parent=1 // pred_check_branch
      %9 = sbr.rel (0) target = $region5
    $region4: #{tpu_custom_call.1} parent=1 // pred_region
      _
    $region5: #{tpu_custom_call.1} parent=1 // pred_fallthru
      _
    // Predicated region
    $region6: #{tpu_custom_call.1} parent=1 // pred_check
      _
    $region7: #{tpu_custom_call.1} parent=1 // pred_check_branch
      %11 = sbr.rel (0) target = $region9
    $region8: #{tpu_custom_call.1} parent=1 // pred_region
      _
    $region9: #{tpu_custom_call.1} parent=1 // pred_fallthru
      _
    %v13 = vld [vmem:[%s0] sm:$0xff]
    %v14 = vld [vmem:[%s0 + $0x8] sm:$0xff]
    %v15 = vld [vmem:[%s0 + $0x10] sm:$0xff]
    %v16 = vld [vmem:[%s0 + $0x18] sm:$0xff]
    %v17 = vld [vmem:[%s0 + $0x20] sm:$0xff]
    %v18 = vld [vmem:[%s0 + $0x28] sm:$0xff]
    %v19 = vld [vmem:[%s0 + $0x30] sm:$0xff]
    %v20 = vld [vmem:[%s0 + $0x38] sm:$0xff]
    %v21 = vld [vmem:[%s0 + $0x40] sm:$0xff]
    %v22 = vld [vmem:[%s0 + $0x48] sm:$0xff]
    %v23 = vld [vmem:[%s0 + $0x50] sm:$0xff]
    %v24 = vld [vmem:[%s0 + $0x58] sm:$0xff]
    %v25 = vld [vmem:[%s0 + $0x60] sm:$0xff]
    %v26 = vld [vmem:[%s0 + $0x68] sm:$0xff]
    %v27 = vld [vmem:[%s0 + $0x70] sm:$0xff]
    %v28 = vld [vmem:[%s0 + $0x78] sm:$0xff]
    %v29 = vld [vmem:[%s0 + $0x80] sm:$0xff]
    %v30 = vld [vmem:[%s0 + $0x88] sm:$0xff]
    %v31 = vld [vmem:[%s0 + $0x90] sm:$0xff]
    %v32 = vld [vmem:[%s0 + $0x98] sm:$0xff]
    %v33 = vld [vmem:[%s0 + $0xa0] sm:$0xff]
    %v34 = vld [vmem:[%s0 + $0xa8] sm:$0xff]
    %v35 = vld [vmem:[%s0 + $0xb0] sm:$0xff]
    %v36 = vld [vmem:[%s0 + $0xb8] sm:$0xff]
    %v37 = vld [vmem:[%s0 + $0xc0] sm:$0xff]
    %v38 = vld [vmem:[%s0 + $0xc8] sm:$0xff]
    %v39 = vld [vmem:[%s0 + $0xd0] sm:$0xff]
    %v40 = vld [vmem:[%s0 + $0xd8] sm:$0xff]
    %v41 = vld [vmem:[%s0 + $0xe0] sm:$0xff]
    %v42 = vld [vmem:[%s0 + $0xe8] sm:$0xff]
    %v43 = vld [vmem:[%s0 + $0xf0] sm:$0xff]
    %v44 = vld [vmem:[%s0 + $0xf8] sm:$0xff]
    %v45 = vadd.f32 %v13, 1.0
    %v46 = vadd.f32 %v14, 1.0
    %v47 = vadd.f32 %v15, 1.0
    %v48 = vadd.f32 %v16, 1.0
    %v49 = vadd.f32 %v17, 1.0
    %v50 = vadd.f32 %v18, 1.0
    %v51 = vadd.f32 %v19, 1.0
    %v52 = vadd.f32 %v20, 1.0
    %v53 = vadd.f32 %v21, 1.0
    %v54 = vadd.f32 %v22, 1.0
    %v55 = vadd.f32 %v23, 1.0
    %v56 = vadd.f32 %v24, 1.0
    %v57 = vadd.f32 %v25, 1.0
    %v58 = vadd.f32 %v26, 1.0
    %v59 = vadd.f32 %v27, 1.0
    %v60 = vadd.f32 %v28, 1.0
    %v61 = vadd.f32 %v29, 1.0
    %v62 = vadd.f32 %v30, 1.0
    %v63 = vadd.f32 %v31, 1.0
    %v64 = vadd.f32 %v32, 1.0
    %v65 = vadd.f32 %v33, 1.0
    %v66 = vadd.f32 %v34, 1.0
    %v67 = vadd.f32 %v35, 1.0
    %v68 = vadd.f32 %v36, 1.0
    %v69 = vadd.f32 %v37, 1.0
    %v70 = vadd.f32 %v38, 1.0
    %v71 = vadd.f32 %v39, 1.0
    %v72 = vadd.f32 %v40, 1.0
    %v73 = vadd.f32 %v41, 1.0
    %v74 = vadd.f32 %v42, 1.0
    %v75 = vadd.f32 %v43, 1.0
    %v76 = vadd.f32 %v44, 1.0
    %v77 = vmul.f32 %v45, 7.5
    %v78 = vmul.f32 %v46, 7.5
    %v79 = vmul.f32 %v47, 7.5
    %v80 = vmul.f32 %v48, 7.5
    %v81 = vmul.f32 %v49, 7.5
    %v82 = vmul.f32 %v50, 7.5
    %v83 = vmul.f32 %v51, 7.5
    %v84 = vmul.f32 %v52, 7.5
    %v85 = vmul.f32 %v53, 7.5
    %v86 = vmul.f32 %v54, 7.5
    %v87 = vmul.f32 %v55, 7.5
    %v88 = vmul.f32 %v56, 7.5
    %v89 = vmul.f32 %v57, 7.5
    %v90 = vmul.f32 %v58, 7.5
    %v91 = vmul.f32 %v59, 7.5
    %v92 = vmul.f32 %v60, 7.5
    %v93 = vmul.f32 %v61, 7.5
    %v94 = vmul.f32 %v62, 7.5
    %v95 = vmul.f32 %v63, 7.5
    %v96 = vmul.f32 %v64, 7.5
    %v97 = vmul.f32 %v65, 7.5
    %v98 = vmul.f32 %v66, 7.5
    %v99 = vmul.f32 %v67, 7.5
    %v100 = vmul.f32 %v68, 7.5
    %v101 = vmul.f32 %v69, 7.5
    %v102 = vmul.f32 %v70, 7.5
    %v103 = vmul.f32 %v71, 7.5
    %v104 = vmul.f32 %v72, 7.5
    %v105 = vmul.f32 %v73, 7.5
    %v106 = vmul.f32 %v74, 7.5
    %v107 = vmul.f32 %v75, 7.5
    %v108 = vmul.f32 %v76, 7.5
    %v109 = vlaneseq
    %v110 = vand.u32 %v109, 127
    %v111 = vadd.s32 %v110, 128
    %v112 = vshra.s32 %v110, 4
    %v113 = vshra.s32 %v111, 4
    %v114 = vcvt.s32.f32 %v112
    %v115 = vcvt.s32.f32 %v113
    %v116 = vand.u32 %v110, 15
    %v117 = vand.u32 %v111, 15
    %v118 = vcvt.s32.f32 %v116
    %v119 = vcvt.s32.f32 %v117
    %121 = vset.pattern.permute.xlu0 0
    %122 = vperm.xlu0 %121, %v77
    %v123 = vpop.permute.xlu0 %122
    %126 = vset.pattern.permute.xlu0 0
    %127 = vperm.xlu0 %126, %v78
    %v128 = vpop.permute.xlu0 %127
    %131 = vset.pattern.permute.xlu0 0
    %132 = vperm.xlu0 %131, %v79
    %v133 = vpop.permute.xlu0 %132
    %136 = vset.pattern.permute.xlu0 0
    %137 = vperm.xlu0 %136, %v80
    %v138 = vpop.permute.xlu0 %137
    %141 = vset.pattern.permute.xlu0 0
    %142 = vperm.xlu0 %141, %v81
    %v143 = vpop.permute.xlu0 %142
    %146 = vset.pattern.permute.xlu0 0
    %147 = vperm.xlu0 %146, %v82
    %v148 = vpop.permute.xlu0 %147
    %151 = vset.pattern.permute.xlu0 0
    %152 = vperm.xlu0 %151, %v83
    %v153 = vpop.permute.xlu0 %152
    %156 = vset.pattern.permute.xlu0 0
    %157 = vperm.xlu0 %156, %v84
    %v158 = vpop.permute.xlu0 %157
    %161 = vset.pattern.permute.xlu0 0
    %162 = vperm.xlu0 %161, %v85
    %v163 = vpop.permute.xlu0 %162
    %166 = vset.pattern.permute.xlu0 0
    %167 = vperm.xlu0 %166, %v86
    %v168 = vpop.permute.xlu0 %167
    %171 = vset.pattern.permute.xlu0 0
    %172 = vperm.xlu0 %171, %v87
    %v173 = vpop.permute.xlu0 %172
    %176 = vset.pattern.permute.xlu0 0
    %177 = vperm.xlu0 %176, %v88
    %v178 = vpop.permute.xlu0 %177
    %181 = vset.pattern.permute.xlu0 0
    %182 = vperm.xlu0 %181, %v89
    %v183 = vpop.permute.xlu0 %182
    %186 = vset.pattern.permute.xlu0 0
    %187 = vperm.xlu0 %186, %v90
    %v188 = vpop.permute.xlu0 %187
    %191 = vset.pattern.permute.xlu0 0
    %192 = vperm.xlu0 %191, %v91
    %v193 = vpop.permute.xlu0 %192
    %196 = vset.pattern.permute.xlu0 0
    %197 = vperm.xlu0 %196, %v92
    %v198 = vpop.permute.xlu0 %197
    %201 = vset.pattern.permute.xlu0 0
    %202 = vperm.xlu0 %201, %v93
    %v203 = vpop.permute.xlu0 %202
    %206 = vset.pattern.permute.xlu0 0
    %207 = vperm.xlu0 %206, %v94
    %v208 = vpop.permute.xlu0 %207
    %211 = vset.pattern.permute.xlu0 0
    %212 = vperm.xlu0 %211, %v95
    %v213 = vpop.permute.xlu0 %212
    %216 = vset.pattern.permute.xlu0 0
    %217 = vperm.xlu0 %216, %v96
    %v218 = vpop.permute.xlu0 %217
    %221 = vset.pattern.permute.xlu0 0
    %222 = vperm.xlu0 %221, %v97
    %v223 = vpop.permute.xlu0 %222
    %226 = vset.pattern.permute.xlu0 0
    %227 = vperm.xlu0 %226, %v98
    %v228 = vpop.permute.xlu0 %227
    %231 = vset.pattern.permute.xlu0 0
    %232 = vperm.xlu0 %231, %v99
    %v233 = vpop.permute.xlu0 %232
    %236 = vset.pattern.permute.xlu0 0
    %237 = vperm.xlu0 %236, %v100
    %v238 = vpop.permute.xlu0 %237
    %241 = vset.pattern.permute.xlu0 0
    %242 = vperm.xlu0 %241, %v101
    %v243 = vpop.permute.xlu0 %242
    %246 = vset.pattern.permute.xlu0 0
    %247 = vperm.xlu0 %246, %v102
    %v248 = vpop.permute.xlu0 %247
    %251 = vset.pattern.permute.xlu0 0
    %252 = vperm.xlu0 %251, %v103
    %v253 = vpop.permute.xlu0 %252
    %256 = vset.pattern.permute.xlu0 0
    %257 = vperm.xlu0 %256, %v104
    %v258 = vpop.permute.xlu0 %257
    %261 = vset.pattern.permute.xlu0 0
    %262 = vperm.xlu0 %261, %v105
    %v263 = vpop.permute.xlu0 %262
    %266 = vset.pattern.permute.xlu0 0
    %267 = vperm.xlu0 %266, %v106
    %v268 = vpop.permute.xlu0 %267
    %271 = vset.pattern.permute.xlu0 0
    %272 = vperm.xlu0 %271, %v107
    %v273 = vpop.permute.xlu0 %272
    %276 = vset.pattern.permute.xlu0 0
    %277 = vperm.xlu0 %276, %v108
    %v278 = vpop.permute.xlu0 %277
    %v280 = vsub.f32 %v123, %v114
    %v281 = vsub.f32 %v123, %v115
    %v282 = vsub.f32 %v128, %v114
    %v283 = vsub.f32 %v128, %v115
    %v284 = vsub.f32 %v133, %v114
    %v285 = vsub.f32 %v133, %v115
    %v286 = vsub.f32 %v138, %v114
    %v287 = vsub.f32 %v138, %v115
    %v288 = vsub.f32 %v143, %v114
    %v289 = vsub.f32 %v143, %v115
    %v290 = vsub.f32 %v148, %v114
    %v291 = vsub.f32 %v148, %v115
    %v292 = vsub.f32 %v153, %v114
    %v293 = vsub.f32 %v153, %v115
    %v294 = vsub.f32 %v158, %v114
    %v295 = vsub.f32 %v158, %v115
    %v296 = vsub.f32 %v163, %v114
    %v297 = vsub.f32 %v163, %v115
    %v298 = vsub.f32 %v168, %v114
    %v299 = vsub.f32 %v168, %v115
    %v300 = vsub.f32 %v173, %v114
    %v301 = vsub.f32 %v173, %v115
    %v302 = vsub.f32 %v178, %v114
    %v303 = vsub.f32 %v178, %v115
    %v304 = vsub.f32 %v183, %v114
    %v305 = vsub.f32 %v183, %v115
    %v306 = vsub.f32 %v188, %v114
    %v307 = vsub.f32 %v188, %v115
    %v308 = vsub.f32 %v193, %v114
    %v309 = vsub.f32 %v193, %v115
    %v310 = vsub.f32 %v198, %v114
    %v311 = vsub.f32 %v198, %v115
    %v312 = vsub.f32 %v203, %v114
    %v313 = vsub.f32 %v203, %v115
    %v314 = vsub.f32 %v208, %v114
    %v315 = vsub.f32 %v208, %v115
    %v316 = vsub.f32 %v213, %v114
    %v317 = vsub.f32 %v213, %v115
    %v318 = vsub.f32 %v218, %v114
    %v319 = vsub.f32 %v218, %v115
    %v320 = vsub.f32 %v223, %v114
    %v321 = vsub.f32 %v223, %v115
    %v322 = vsub.f32 %v228, %v114
    %v323 = vsub.f32 %v228, %v115
    %v324 = vsub.f32 %v233, %v114
    %v325 = vsub.f32 %v233, %v115
    %v326 = vsub.f32 %v238, %v114
    %v327 = vsub.f32 %v238, %v115
    %v328 = vsub.f32 %v243, %v114
    %v329 = vsub.f32 %v243, %v115
    %v330 = vsub.f32 %v248, %v114
    %v331 = vsub.f32 %v248, %v115
    %v332 = vsub.f32 %v253, %v114
    %v333 = vsub.f32 %v253, %v115
    %v334 = vsub.f32 %v258, %v114
    %v335 = vsub.f32 %v258, %v115
    %v336 = vsub.f32 %v263, %v114
    %v337 = vsub.f32 %v263, %v115
    %v338 = vsub.f32 %v268, %v114
    %v339 = vsub.f32 %v268, %v115
    %v340 = vsub.f32 %v273, %v114
    %v341 = vsub.f32 %v273, %v115
    %v342 = vsub.f32 %v278, %v114
    %v343 = vsub.f32 %v278, %v115
    %v344 = vand.u32 2147483647, %v280
    %v345 = vand.u32 2147483647, %v281
    %v346 = vand.u32 2147483647, %v282
    %v347 = vand.u32 2147483647, %v283
    %v348 = vand.u32 2147483647, %v284
    %v349 = vand.u32 2147483647, %v285
    %v350 = vand.u32 2147483647, %v286
    %v351 = vand.u32 2147483647, %v287
    %v352 = vand.u32 2147483647, %v288
    %v353 = vand.u32 2147483647, %v289
    %v354 = vand.u32 2147483647, %v290
    %v355 = vand.u32 2147483647, %v291
    %v356 = vand.u32 2147483647, %v292
    %v357 = vand.u32 2147483647, %v293
    %v358 = vand.u32 2147483647, %v294
    %v359 = vand.u32 2147483647, %v295
    %v360 = vand.u32 2147483647, %v296
    %v361 = vand.u32 2147483647, %v297
    %v362 = vand.u32 2147483647, %v298
    %v363 = vand.u32 2147483647, %v299
    %v364 = vand.u32 2147483647, %v300
    %v365 = vand.u32 2147483647, %v301
    %v366 = vand.u32 2147483647, %v302
    %v367 = vand.u32 2147483647, %v303
    %v368 = vand.u32 2147483647, %v304
    %v369 = vand.u32 2147483647, %v305
    %v370 = vand.u32 2147483647, %v306
    %v371 = vand.u32 2147483647, %v307
    %v372 = vand.u32 2147483647, %v308
    %v373 = vand.u32 2147483647, %v309
    %v374 = vand.u32 2147483647, %v310
    %v375 = vand.u32 2147483647, %v311
    %v376 = vand.u32 2147483647, %v312
    %v377 = vand.u32 2147483647, %v313
    %v378 = vand.u32 2147483647, %v314
    %v379 = vand.u32 2147483647, %v315
    %v380 = vand.u32 2147483647, %v316
    %v381 = vand.u32 2147483647, %v317
    %v382 = vand.u32 2147483647, %v318
    %v383 = vand.u32 2147483647, %v319
    %v384 = vand.u32 2147483647, %v320
    %v385 = vand.u32 2147483647, %v321
    %v386 = vand.u32 2147483647, %v322
    %v387 = vand.u32 2147483647, %v323
    %v388 = vand.u32 2147483647, %v324
    %v389 = vand.u32 2147483647, %v325
    %v390 = vand.u32 2147483647, %v326
    %v391 = vand.u32 2147483647, %v327
    %v392 = vand.u32 2147483647, %v328
    %v393 = vand.u32 2147483647, %v329
    %v394 = vand.u32 2147483647, %v330
    %v395 = vand.u32 2147483647, %v331
    %v396 = vand.u32 2147483647, %v332
    %v397 = vand.u32 2147483647, %v333
    %v398 = vand.u32 2147483647, %v334
    %v399 = vand.u32 2147483647, %v335
    %v400 = vand.u32 2147483647, %v336
    %v401 = vand.u32 2147483647, %v337
    %v402 = vand.u32 2147483647, %v338
    %v403 = vand.u32 2147483647, %v339
    %v404 = vand.u32 2147483647, %v340
    %v405 = vand.u32 2147483647, %v341
    %v406 = vand.u32 2147483647, %v342
    %v407 = vand.u32 2147483647, %v343
    %v408 = vsub.f32 1.0, %v344
    %v409 = vsub.f32 1.0, %v345
    %v410 = vsub.f32 1.0, %v346
    %v411 = vsub.f32 1.0, %v347
    %v412 = vsub.f32 1.0, %v348
    %v413 = vsub.f32 1.0, %v349
    %v414 = vsub.f32 1.0, %v350
    %v415 = vsub.f32 1.0, %v351
    %v416 = vsub.f32 1.0, %v352
    %v417 = vsub.f32 1.0, %v353
    %v418 = vsub.f32 1.0, %v354
    %v419 = vsub.f32 1.0, %v355
    %v420 = vsub.f32 1.0, %v356
    %v421 = vsub.f32 1.0, %v357
    %v422 = vsub.f32 1.0, %v358
    %v423 = vsub.f32 1.0, %v359
    %v424 = vsub.f32 1.0, %v360
    %v425 = vsub.f32 1.0, %v361
    %v426 = vsub.f32 1.0, %v362
    %v427 = vsub.f32 1.0, %v363
    %v428 = vsub.f32 1.0, %v364
    %v429 = vsub.f32 1.0, %v365
    %v430 = vsub.f32 1.0, %v366
    %v431 = vsub.f32 1.0, %v367
    %v432 = vsub.f32 1.0, %v368
    %v433 = vsub.f32 1.0, %v369
    %v434 = vsub.f32 1.0, %v370
    %v435 = vsub.f32 1.0, %v371
    %v436 = vsub.f32 1.0, %v372
    %v437 = vsub.f32 1.0, %v373
    %v438 = vsub.f32 1.0, %v374
    %v439 = vsub.f32 1.0, %v375
    %v440 = vsub.f32 1.0, %v376
    %v441 = vsub.f32 1.0, %v377
    %v442 = vsub.f32 1.0, %v378
    %v443 = vsub.f32 1.0, %v379
    %v444 = vsub.f32 1.0, %v380
    %v445 = vsub.f32 1.0, %v381
    %v446 = vsub.f32 1.0, %v382
    %v447 = vsub.f32 1.0, %v383
    %v448 = vsub.f32 1.0, %v384
    %v449 = vsub.f32 1.0, %v385
    %v450 = vsub.f32 1.0, %v386
    %v451 = vsub.f32 1.0, %v387
    %v452 = vsub.f32 1.0, %v388
    %v453 = vsub.f32 1.0, %v389
    %v454 = vsub.f32 1.0, %v390
    %v455 = vsub.f32 1.0, %v391
    %v456 = vsub.f32 1.0, %v392
    %v457 = vsub.f32 1.0, %v393
    %v458 = vsub.f32 1.0, %v394
    %v459 = vsub.f32 1.0, %v395
    %v460 = vsub.f32 1.0, %v396
    %v461 = vsub.f32 1.0, %v397
    %v462 = vsub.f32 1.0, %v398
    %v463 = vsub.f32 1.0, %v399
    %v464 = vsub.f32 1.0, %v400
    %v465 = vsub.f32 1.0, %v401
    %v466 = vsub.f32 1.0, %v402
    %v467 = vsub.f32 1.0, %v403
    %v468 = vsub.f32 1.0, %v404
    %v469 = vsub.f32 1.0, %v405
    %v470 = vsub.f32 1.0, %v406
    %v471 = vsub.f32 1.0, %v407
    %v472 = vmax.f32 %v408, 0.0
    %v473 = vmax.f32 %v409, 0.0
    %v474 = vmax.f32 %v410, 0.0
    %v475 = vmax.f32 %v411, 0.0
    %v476 = vmax.f32 %v412, 0.0
    %v477 = vmax.f32 %v413, 0.0
    %v478 = vmax.f32 %v414, 0.0
    %v479 = vmax.f32 %v415, 0.0
    %v480 = vmax.f32 %v416, 0.0
    %v481 = vmax.f32 %v417, 0.0
    %v482 = vmax.f32 %v418, 0.0
    %v483 = vmax.f32 %v419, 0.0
    %v484 = vmax.f32 %v420, 0.0
    %v485 = vmax.f32 %v421, 0.0
    %v486 = vmax.f32 %v422, 0.0
    %v487 = vmax.f32 %v423, 0.0
    %v488 = vmax.f32 %v424, 0.0
    %v489 = vmax.f32 %v425, 0.0
    %v490 = vmax.f32 %v426, 0.0
    %v491 = vmax.f32 %v427, 0.0
    %v492 = vmax.f32 %v428, 0.0
    %v493 = vmax.f32 %v429, 0.0
    %v494 = vmax.f32 %v430, 0.0
    %v495 = vmax.f32 %v431, 0.0
    %v496 = vmax.f32 %v432, 0.0
    %v497 = vmax.f32 %v433, 0.0
    %v498 = vmax.f32 %v434, 0.0
    %v499 = vmax.f32 %v435, 0.0
    %v500 = vmax.f32 %v436, 0.0
    %v501 = vmax.f32 %v437, 0.0
    %v502 = vmax.f32 %v438, 0.0
    %v503 = vmax.f32 %v439, 0.0
    %v504 = vmax.f32 %v440, 0.0
    %v505 = vmax.f32 %v441, 0.0
    %v506 = vmax.f32 %v442, 0.0
    %v507 = vmax.f32 %v443, 0.0
    %v508 = vmax.f32 %v444, 0.0
    %v509 = vmax.f32 %v445, 0.0
    %v510 = vmax.f32 %v446, 0.0
    %v511 = vmax.f32 %v447, 0.0
    %v512 = vmax.f32 %v448, 0.0
    %v513 = vmax.f32 %v449, 0.0
    %v514 = vmax.f32 %v450, 0.0
    %v515 = vmax.f32 %v451, 0.0
    %v516 = vmax.f32 %v452, 0.0
    %v517 = vmax.f32 %v453, 0.0
    %v518 = vmax.f32 %v454, 0.0
    %v519 = vmax.f32 %v455, 0.0
    %v520 = vmax.f32 %v456, 0.0
    %v521 = vmax.f32 %v457, 0.0
    %v522 = vmax.f32 %v458, 0.0
    %v523 = vmax.f32 %v459, 0.0
    %v524 = vmax.f32 %v460, 0.0
    %v525 = vmax.f32 %v461, 0.0
    %v526 = vmax.f32 %v462, 0.0
    %v527 = vmax.f32 %v463, 0.0
    %v528 = vmax.f32 %v464, 0.0
    %v529 = vmax.f32 %v465, 0.0
    %v530 = vmax.f32 %v466, 0.0
    %v531 = vmax.f32 %v467, 0.0
    %v532 = vmax.f32 %v468, 0.0
    %v533 = vmax.f32 %v469, 0.0
    %v534 = vmax.f32 %v470, 0.0
    %v535 = vmax.f32 %v471, 0.0
    %536 = vset.pattern.permute.xlu0 1
    %537 = vperm.xlu0 %536, %v77
    %v538 = vpop.permute.xlu0 %537
    %540 = vset.pattern.permute.xlu0 1
    %541 = vperm.xlu0 %540, %v78
    %v542 = vpop.permute.xlu0 %541
    %544 = vset.pattern.permute.xlu0 1
    %545 = vperm.xlu0 %544, %v79
    %v546 = vpop.permute.xlu0 %545
    %548 = vset.pattern.permute.xlu0 1
    %549 = vperm.xlu0 %548, %v80
    %v550 = vpop.permute.xlu0 %549
    %552 = vset.pattern.permute.xlu0 1
    %553 = vperm.xlu0 %552, %v81
    %v554 = vpop.permute.xlu0 %553
    %556 = vset.pattern.permute.xlu0 1
    %557 = vperm.xlu0 %556, %v82
    %v558 = vpop.permute.xlu0 %557
    %560 = vset.pattern.permute.xlu0 1
    %561 = vperm.xlu0 %560, %v83
    %v562 = vpop.permute.xlu0 %561
    %564 = vset.pattern.permute.xlu0 1
    %565 = vperm.xlu0 %564, %v84
    %v566 = vpop.permute.xlu0 %565
    %568 = vset.pattern.permute.xlu0 1
    %569 = vperm.xlu0 %568, %v85
    %v570 = vpop.permute.xlu0 %569
    %572 = vset.pattern.permute.xlu0 1
    %573 = vperm.xlu0 %572, %v86
    %v574 = vpop.permute.xlu0 %573
    %576 = vset.pattern.permute.xlu0 1
    %577 = vperm.xlu0 %576, %v87
    %v578 = vpop.permute.xlu0 %577
    %580 = vset.pattern.permute.xlu0 1
    %581 = vperm.xlu0 %580, %v88
    %v582 = vpop.permute.xlu0 %581
    %584 = vset.pattern.permute.xlu0 1
    %585 = vperm.xlu0 %584, %v89
    %v586 = vpop.permute.xlu0 %585
    %588 = vset.pattern.permute.xlu0 1
    %589 = vperm.xlu0 %588, %v90
    %v590 = vpop.permute.xlu0 %589
    %592 = vset.pattern.permute.xlu0 1
    %593 = vperm.xlu0 %592, %v91
    %v594 = vpop.permute.xlu0 %593
    %596 = vset.pattern.permute.xlu0 1
    %597 = vperm.xlu0 %596, %v92
    %v598 = vpop.permute.xlu0 %597
    %600 = vset.pattern.permute.xlu0 1
    %601 = vperm.xlu0 %600, %v93
    %v602 = vpop.permute.xlu0 %601
    %604 = vset.pattern.permute.xlu0 1
    %605 = vperm.xlu0 %604, %v94
    %v606 = vpop.permute.xlu0 %605
    %608 = vset.pattern.permute.xlu0 1
    %609 = vperm.xlu0 %608, %v95
    %v610 = vpop.permute.xlu0 %609
    %612 = vset.pattern.permute.xlu0 1
    %613 = vperm.xlu0 %612, %v96
    %v614 = vpop.permute.xlu0 %613
    %616 = vset.pattern.permute.xlu0 1
    %617 = vperm.xlu0 %616, %v97
    %v618 = vpop.permute.xlu0 %617
    %620 = vset.pattern.permute.xlu0 1
    %621 = vperm.xlu0 %620, %v98
    %v622 = vpop.permute.xlu0 %621
    %624 = vset.pattern.permute.xlu0 1
    %625 = vperm.xlu0 %624, %v99
    %v626 = vpop.permute.xlu0 %625
    %628 = vset.pattern.permute.xlu0 1
    %629 = vperm.xlu0 %628, %v100
    %v630 = vpop.permute.xlu0 %629
    %632 = vset.pattern.permute.xlu0 1
    %633 = vperm.xlu0 %632, %v101
    %v634 = vpop.permute.xlu0 %633
    %636 = vset.pattern.permute.xlu0 1
    %637 = vperm.xlu0 %636, %v102
    %v638 = vpop.permute.xlu0 %637
    %640 = vset.pattern.permute.xlu0 1
    %641 = vperm.xlu0 %640, %v103
    %v642 = vpop.permute.xlu0 %641
    %644 = vset.pattern.permute.xlu0 1
    %645 = vperm.xlu0 %644, %v104
    %v646 = vpop.permute.xlu0 %645
    %648 = vset.pattern.permute.xlu0 1
    %649 = vperm.xlu0 %648, %v105
    %v650 = vpop.permute.xlu0 %649
    %652 = vset.pattern.permute.xlu0 1
    %653 = vperm.xlu0 %652, %v106
    %v654 = vpop.permute.xlu0 %653
    %656 = vset.pattern.permute.xlu0 1
    %657 = vperm.xlu0 %656, %v107
    %v658 = vpop.permute.xlu0 %657
    %660 = vset.pattern.permute.xlu0 1
    %661 = vperm.xlu0 %660, %v108
    %v662 = vpop.permute.xlu0 %661
    %v664 = vsub.f32 %v538, %v118
    %v665 = vsub.f32 %v538, %v119
    %v666 = vsub.f32 %v542, %v118
    %v667 = vsub.f32 %v542, %v119
    %v668 = vsub.f32 %v546, %v118
    %v669 = vsub.f32 %v546, %v119
    %v670 = vsub.f32 %v550, %v118
    %v671 = vsub.f32 %v550, %v119
    %v672 = vsub.f32 %v554, %v118
    %v673 = vsub.f32 %v554, %v119
    %v674 = vsub.f32 %v558, %v118
    %v675 = vsub.f32 %v558, %v119
    %v676 = vsub.f32 %v562, %v118
    %v677 = vsub.f32 %v562, %v119
    %v678 = vsub.f32 %v566, %v118
    %v679 = vsub.f32 %v566, %v119
    %v680 = vsub.f32 %v570, %v118
    %v681 = vsub.f32 %v570, %v119
    %v682 = vsub.f32 %v574, %v118
    %v683 = vsub.f32 %v574, %v119
    %v684 = vsub.f32 %v578, %v118
    %v685 = vsub.f32 %v578, %v119
    %v686 = vsub.f32 %v582, %v118
    %v687 = vsub.f32 %v582, %v119
    %v688 = vsub.f32 %v586, %v118
    %v689 = vsub.f32 %v586, %v119
    %v690 = vsub.f32 %v590, %v118
    %v691 = vsub.f32 %v590, %v119
    %v692 = vsub.f32 %v594, %v118
    %v693 = vsub.f32 %v594, %v119
    %v694 = vsub.f32 %v598, %v118
    %v695 = vsub.f32 %v598, %v119
    %v696 = vsub.f32 %v602, %v118
    %v697 = vsub.f32 %v602, %v119
    %v698 = vsub.f32 %v606, %v118
    %v699 = vsub.f32 %v606, %v119
    %v700 = vsub.f32 %v610, %v118
    %v701 = vsub.f32 %v610, %v119
    %v702 = vsub.f32 %v614, %v118
    %v703 = vsub.f32 %v614, %v119
    %v704 = vsub.f32 %v618, %v118
    %v705 = vsub.f32 %v618, %v119
    %v706 = vsub.f32 %v622, %v118
    %v707 = vsub.f32 %v622, %v119
    %v708 = vsub.f32 %v626, %v118
    %v709 = vsub.f32 %v626, %v119
    %v710 = vsub.f32 %v630, %v118
    %v711 = vsub.f32 %v630, %v119
    %v712 = vsub.f32 %v634, %v118
    %v713 = vsub.f32 %v634, %v119
    %v714 = vsub.f32 %v638, %v118
    %v715 = vsub.f32 %v638, %v119
    %v716 = vsub.f32 %v642, %v118
    %v717 = vsub.f32 %v642, %v119
    %v718 = vsub.f32 %v646, %v118
    %v719 = vsub.f32 %v646, %v119
    %v720 = vsub.f32 %v650, %v118
    %v721 = vsub.f32 %v650, %v119
    %v722 = vsub.f32 %v654, %v118
    %v723 = vsub.f32 %v654, %v119
    %v724 = vsub.f32 %v658, %v118
    %v725 = vsub.f32 %v658, %v119
    %v726 = vsub.f32 %v662, %v118
    %v727 = vsub.f32 %v662, %v119
    %v728 = vand.u32 2147483647, %v664
    %v729 = vand.u32 2147483647, %v665
    %v730 = vand.u32 2147483647, %v666
    %v731 = vand.u32 2147483647, %v667
    %v732 = vand.u32 2147483647, %v668
    %v733 = vand.u32 2147483647, %v669
    %v734 = vand.u32 2147483647, %v670
    %v735 = vand.u32 2147483647, %v671
    %v736 = vand.u32 2147483647, %v672
    %v737 = vand.u32 2147483647, %v673
    %v738 = vand.u32 2147483647, %v674
    %v739 = vand.u32 2147483647, %v675
    %v740 = vand.u32 2147483647, %v676
    %v741 = vand.u32 2147483647, %v677
    %v742 = vand.u32 2147483647, %v678
    %v743 = vand.u32 2147483647, %v679
    %v744 = vand.u32 2147483647, %v680
    %v745 = vand.u32 2147483647, %v681
    %v746 = vand.u32 2147483647, %v682
    %v747 = vand.u32 2147483647, %v683
    %v748 = vand.u32 2147483647, %v684
    %v749 = vand.u32 2147483647, %v685
    %v750 = vand.u32 2147483647, %v686
    %v751 = vand.u32 2147483647, %v687
    %v752 = vand.u32 2147483647, %v688
    %v753 = vand.u32 2147483647, %v689
    %v754 = vand.u32 2147483647, %v690
    %v755 = vand.u32 2147483647, %v691
    %v756 = vand.u32 2147483647, %v692
    %v757 = vand.u32 2147483647, %v693
    %v758 = vand.u32 2147483647, %v694
    %v759 = vand.u32 2147483647, %v695
    %v760 = vand.u32 2147483647, %v696
    %v761 = vand.u32 2147483647, %v697
    %v762 = vand.u32 2147483647, %v698
    %v763 = vand.u32 2147483647, %v699
    %v764 = vand.u32 2147483647, %v700
    %v765 = vand.u32 2147483647, %v701
    %v766 = vand.u32 2147483647, %v702
    %v767 = vand.u32 2147483647, %v703
    %v768 = vand.u32 2147483647, %v704
    %v769 = vand.u32 2147483647, %v705
    %v770 = vand.u32 2147483647, %v706
    %v771 = vand.u32 2147483647, %v707
    %v772 = vand.u32 2147483647, %v708
    %v773 = vand.u32 2147483647, %v709
    %v774 = vand.u32 2147483647, %v710
    %v775 = vand.u32 2147483647, %v711
    %v776 = vand.u32 2147483647, %v712
    %v777 = vand.u32 2147483647, %v713
    %v778 = vand.u32 2147483647, %v714
    %v779 = vand.u32 2147483647, %v715
    %v780 = vand.u32 2147483647, %v716
    %v781 = vand.u32 2147483647, %v717
    %v782 = vand.u32 2147483647, %v718
    %v783 = vand.u32 2147483647, %v719
    %v784 = vand.u32 2147483647, %v720
    %v785 = vand.u32 2147483647, %v721
    %v786 = vand.u32 2147483647, %v722
    %v787 = vand.u32 2147483647, %v723
    %v788 = vand.u32 2147483647, %v724
    %v789 = vand.u32 2147483647, %v725
    %v790 = vand.u32 2147483647, %v726
    %v791 = vand.u32 2147483647, %v727
    %v792 = vsub.f32 1.0, %v728
    %v793 = vsub.f32 1.0, %v729
    %v794 = vsub.f32 1.0, %v730
    %v795 = vsub.f32 1.0, %v731
    %v796 = vsub.f32 1.0, %v732
    %v797 = vsub.f32 1.0, %v733
    %v798 = vsub.f32 1.0, %v734
    %v799 = vsub.f32 1.0, %v735
    %v800 = vsub.f32 1.0, %v736
    %v801 = vsub.f32 1.0, %v737
    %v802 = vsub.f32 1.0, %v738
    %v803 = vsub.f32 1.0, %v739
    %v804 = vsub.f32 1.0, %v740
    %v805 = vsub.f32 1.0, %v741
    %v806 = vsub.f32 1.0, %v742
    %v807 = vsub.f32 1.0, %v743
    %v808 = vsub.f32 1.0, %v744
    %v809 = vsub.f32 1.0, %v745
    %v810 = vsub.f32 1.0, %v746
    %v811 = vsub.f32 1.0, %v747
    %v812 = vsub.f32 1.0, %v748
    %v813 = vsub.f32 1.0, %v749
    %v814 = vsub.f32 1.0, %v750
    %v815 = vsub.f32 1.0, %v751
    %v816 = vsub.f32 1.0, %v752
    %v817 = vsub.f32 1.0, %v753
    %v818 = vsub.f32 1.0, %v754
    %v819 = vsub.f32 1.0, %v755
    %v820 = vsub.f32 1.0, %v756
    %v821 = vsub.f32 1.0, %v757
    %v822 = vsub.f32 1.0, %v758
    %v823 = vsub.f32 1.0, %v759
    %v824 = vsub.f32 1.0, %v760
    %v825 = vsub.f32 1.0, %v761
    %v826 = vsub.f32 1.0, %v762
    %v827 = vsub.f32 1.0, %v763
    %v828 = vsub.f32 1.0, %v764
    %v829 = vsub.f32 1.0, %v765
    %v830 = vsub.f32 1.0, %v766
    %v831 = vsub.f32 1.0, %v767
    %v832 = vsub.f32 1.0, %v768
    %v833 = vsub.f32 1.0, %v769
    %v834 = vsub.f32 1.0, %v770
    %v835 = vsub.f32 1.0, %v771
    %v836 = vsub.f32 1.0, %v772
    %v837 = vsub.f32 1.0, %v773
    %v838 = vsub.f32 1.0, %v774
    %v839 = vsub.f32 1.0, %v775
    %v840 = vsub.f32 1.0, %v776
    %v841 = vsub.f32 1.0, %v777
    %v842 = vsub.f32 1.0, %v778
    %v843 = vsub.f32 1.0, %v779
    %v844 = vsub.f32 1.0, %v780
    %v845 = vsub.f32 1.0, %v781
    %v846 = vsub.f32 1.0, %v782
    %v847 = vsub.f32 1.0, %v783
    %v848 = vsub.f32 1.0, %v784
    %v849 = vsub.f32 1.0, %v785
    %v850 = vsub.f32 1.0, %v786
    %v851 = vsub.f32 1.0, %v787
    %v852 = vsub.f32 1.0, %v788
    %v853 = vsub.f32 1.0, %v789
    %v854 = vsub.f32 1.0, %v790
    %v855 = vsub.f32 1.0, %v791
    %v856 = vmax.f32 %v792, 0.0
    %v857 = vmax.f32 %v793, 0.0
    %v858 = vmax.f32 %v794, 0.0
    %v859 = vmax.f32 %v795, 0.0
    %v860 = vmax.f32 %v796, 0.0
    %v861 = vmax.f32 %v797, 0.0
    %v862 = vmax.f32 %v798, 0.0
    %v863 = vmax.f32 %v799, 0.0
    %v864 = vmax.f32 %v800, 0.0
    %v865 = vmax.f32 %v801, 0.0
    %v866 = vmax.f32 %v802, 0.0
    %v867 = vmax.f32 %v803, 0.0
    %v868 = vmax.f32 %v804, 0.0
    %v869 = vmax.f32 %v805, 0.0
    %v870 = vmax.f32 %v806, 0.0
    %v871 = vmax.f32 %v807, 0.0
    %v872 = vmax.f32 %v808, 0.0
    %v873 = vmax.f32 %v809, 0.0
    %v874 = vmax.f32 %v810, 0.0
    %v875 = vmax.f32 %v811, 0.0
    %v876 = vmax.f32 %v812, 0.0
    %v877 = vmax.f32 %v813, 0.0
    %v878 = vmax.f32 %v814, 0.0
    %v879 = vmax.f32 %v815, 0.0
    %v880 = vmax.f32 %v816, 0.0
    %v881 = vmax.f32 %v817, 0.0
    %v882 = vmax.f32 %v818, 0.0
    %v883 = vmax.f32 %v819, 0.0
    %v884 = vmax.f32 %v820, 0.0
    %v885 = vmax.f32 %v821, 0.0
    %v886 = vmax.f32 %v822, 0.0
    %v887 = vmax.f32 %v823, 0.0
    %v888 = vmax.f32 %v824, 0.0
    %v889 = vmax.f32 %v825, 0.0
    %v890 = vmax.f32 %v826, 0.0
    %v891 = vmax.f32 %v827, 0.0
    %v892 = vmax.f32 %v828, 0.0
    %v893 = vmax.f32 %v829, 0.0
    %v894 = vmax.f32 %v830, 0.0
    %v895 = vmax.f32 %v831, 0.0
    %v896 = vmax.f32 %v832, 0.0
    %v897 = vmax.f32 %v833, 0.0
    %v898 = vmax.f32 %v834, 0.0
    %v899 = vmax.f32 %v835, 0.0
    %v900 = vmax.f32 %v836, 0.0
    %v901 = vmax.f32 %v837, 0.0
    %v902 = vmax.f32 %v838, 0.0
    %v903 = vmax.f32 %v839, 0.0
    %v904 = vmax.f32 %v840, 0.0
    %v905 = vmax.f32 %v841, 0.0
    %v906 = vmax.f32 %v842, 0.0
    %v907 = vmax.f32 %v843, 0.0
    %v908 = vmax.f32 %v844, 0.0
    %v909 = vmax.f32 %v845, 0.0
    %v910 = vmax.f32 %v846, 0.0
    %v911 = vmax.f32 %v847, 0.0
    %v912 = vmax.f32 %v848, 0.0
    %v913 = vmax.f32 %v849, 0.0
    %v914 = vmax.f32 %v850, 0.0
    %v915 = vmax.f32 %v851, 0.0
    %v916 = vmax.f32 %v852, 0.0
    %v917 = vmax.f32 %v853, 0.0
    %v918 = vmax.f32 %v854, 0.0
    %v919 = vmax.f32 %v855, 0.0
    %v920 = vmul.f32 %v472, %v856
    %v921 = vmul.f32 %v473, %v857
    %v922 = vmul.f32 %v474, %v858
    %v923 = vmul.f32 %v475, %v859
    %v924 = vmul.f32 %v476, %v860
    %v925 = vmul.f32 %v477, %v861
    %v926 = vmul.f32 %v478, %v862
    %v927 = vmul.f32 %v479, %v863
    %v928 = vmul.f32 %v480, %v864
    %v929 = vmul.f32 %v481, %v865
    %v930 = vmul.f32 %v482, %v866
    %v931 = vmul.f32 %v483, %v867
    %v932 = vmul.f32 %v484, %v868
    %v933 = vmul.f32 %v485, %v869
    %v934 = vmul.f32 %v486, %v870
    %v935 = vmul.f32 %v487, %v871
    %v936 = vmul.f32 %v488, %v872
    %v937 = vmul.f32 %v489, %v873
    %v938 = vmul.f32 %v490, %v874
    %v939 = vmul.f32 %v491, %v875
    %v940 = vmul.f32 %v492, %v876
    %v941 = vmul.f32 %v493, %v877
    %v942 = vmul.f32 %v494, %v878
    %v943 = vmul.f32 %v495, %v879
    %v944 = vmul.f32 %v496, %v880
    %v945 = vmul.f32 %v497, %v881
    %v946 = vmul.f32 %v498, %v882
    %v947 = vmul.f32 %v499, %v883
    %v948 = vmul.f32 %v500, %v884
    %v949 = vmul.f32 %v501, %v885
    %v950 = vmul.f32 %v502, %v886
    %v951 = vmul.f32 %v503, %v887
    %v952 = vmul.f32 %v504, %v888
    %v953 = vmul.f32 %v505, %v889
    %v954 = vmul.f32 %v506, %v890
    %v955 = vmul.f32 %v507, %v891
    %v956 = vmul.f32 %v508, %v892
    %v957 = vmul.f32 %v509, %v893
    %v958 = vmul.f32 %v510, %v894
    %v959 = vmul.f32 %v511, %v895
    %v960 = vmul.f32 %v512, %v896
    %v961 = vmul.f32 %v513, %v897
    %v962 = vmul.f32 %v514, %v898
    %v963 = vmul.f32 %v515, %v899
    %v964 = vmul.f32 %v516, %v900
    %v965 = vmul.f32 %v517, %v901
    %v966 = vmul.f32 %v518, %v902
    %v967 = vmul.f32 %v519, %v903
    %v968 = vmul.f32 %v520, %v904
    %v969 = vmul.f32 %v521, %v905
    %v970 = vmul.f32 %v522, %v906
    %v971 = vmul.f32 %v523, %v907
    %v972 = vmul.f32 %v524, %v908
    %v973 = vmul.f32 %v525, %v909
    %v974 = vmul.f32 %v526, %v910
    %v975 = vmul.f32 %v527, %v911
    %v976 = vmul.f32 %v528, %v912
    %v977 = vmul.f32 %v529, %v913
    %v978 = vmul.f32 %v530, %v914
    %v979 = vmul.f32 %v531, %v915
    %v980 = vmul.f32 %v532, %v916
    %v981 = vmul.f32 %v533, %v917
    %v982 = vmul.f32 %v534, %v918
    %v983 = vmul.f32 %v535, %v919
    %v984 = vld [vmem:[%s1] sm:$0xf]
    %v985 = vld [vmem:[%s1 + $0x4] sm:$0xf]
    %v986 = vld [vmem:[%s1 + $0x8] sm:$0xf]
    %v987 = vld [vmem:[%s1 + $0xc] sm:$0xf]
    %v988 = vld [vmem:[%s1 + $0x10] sm:$0xf]
    %v989 = vld [vmem:[%s1 + $0x14] sm:$0xf]
    %v990 = vld [vmem:[%s1 + $0x18] sm:$0xf]
    %v991 = vld [vmem:[%s1 + $0x1c] sm:$0xf]
    %v992 = vld [vmem:[%s1 + $0x20] sm:$0xf]
    %v993 = vld [vmem:[%s1 + $0x24] sm:$0xf]
    %v994 = vld [vmem:[%s1 + $0x28] sm:$0xf]
    %v995 = vld [vmem:[%s1 + $0x2c] sm:$0xf]
    %v996 = vld [vmem:[%s1 + $0x30] sm:$0xf]
    %v997 = vld [vmem:[%s1 + $0x34] sm:$0xf]
    %v998 = vld [vmem:[%s1 + $0x38] sm:$0xf]
    %v999 = vld [vmem:[%s1 + $0x3c] sm:$0xf]
    %v1000 = vld [vmem:[%s1 + $0x40] sm:$0xf]
    %v1001 = vld [vmem:[%s1 + $0x44] sm:$0xf]
    %v1002 = vld [vmem:[%s1 + $0x48] sm:$0xf]
    %v1003 = vld [vmem:[%s1 + $0x4c] sm:$0xf]
    %v1004 = vld [vmem:[%s1 + $0x50] sm:$0xf]
    %v1005 = vld [vmem:[%s1 + $0x54] sm:$0xf]
    %v1006 = vld [vmem:[%s1 + $0x58] sm:$0xf]
    %v1007 = vld [vmem:[%s1 + $0x5c] sm:$0xf]
    %v1008 = vld [vmem:[%s1 + $0x60] sm:$0xf]
    %v1009 = vld [vmem:[%s1 + $0x64] sm:$0xf]
    %v1010 = vld [vmem:[%s1 + $0x68] sm:$0xf]
    %v1011 = vld [vmem:[%s1 + $0x6c] sm:$0xf]
    %v1012 = vld [vmem:[%s1 + $0x70] sm:$0xf]
    %v1013 = vld [vmem:[%s1 + $0x74] sm:$0xf]
    %v1014 = vld [vmem:[%s1 + $0x78] sm:$0xf]
    %v1015 = vld [vmem:[%s1 + $0x7c] sm:$0xf]
    %v1016 = vpack.c.bf16 %v922, %v920
    %v1017 = vpack.c.bf16 %v923, %v921
    %v1018 = vpack.c.bf16 %v926, %v924
    %v1019 = vpack.c.bf16 %v927, %v925
    %v1020 = vpack.c.bf16 %v930, %v928
    %v1021 = vpack.c.bf16 %v931, %v929
    %v1022 = vpack.c.bf16 %v934, %v932
    %v1023 = vpack.c.bf16 %v935, %v933
    %v1024 = vpack.c.bf16 %v938, %v936
    %v1025 = vpack.c.bf16 %v939, %v937
    %v1026 = vpack.c.bf16 %v942, %v940
    %v1027 = vpack.c.bf16 %v943, %v941
    %v1028 = vpack.c.bf16 %v946, %v944
    %v1029 = vpack.c.bf16 %v947, %v945
    %v1030 = vpack.c.bf16 %v950, %v948
    %v1031 = vpack.c.bf16 %v951, %v949
    %v1032 = vpack.c.bf16 %v954, %v952
    %v1033 = vpack.c.bf16 %v955, %v953
    %v1034 = vpack.c.bf16 %v958, %v956
    %v1035 = vpack.c.bf16 %v959, %v957
    %v1036 = vpack.c.bf16 %v962, %v960
    %v1037 = vpack.c.bf16 %v963, %v961
    %v1038 = vpack.c.bf16 %v966, %v964
    %v1039 = vpack.c.bf16 %v967, %v965
    %v1040 = vpack.c.bf16 %v970, %v968
    %v1041 = vpack.c.bf16 %v971, %v969
    %v1042 = vpack.c.bf16 %v974, %v972
    %v1043 = vpack.c.bf16 %v975, %v973
    %v1044 = vpack.c.bf16 %v978, %v976
    %v1045 = vpack.c.bf16 %v979, %v977
    %v1046 = vpack.c.bf16 %v982, %v980
    %v1047 = vpack.c.bf16 %v983, %v981
    %v1080 = vunpack.c.l.b16 %v984
    %v1081 = vunpack.c.l.b16 %v985
    %v1082 = vunpack.c.l.b16 %v986
    %v1083 = vunpack.c.l.b16 %v987
    %v1084 = vunpack.c.l.b16 %v988
    %v1085 = vunpack.c.l.b16 %v989
    %v1086 = vunpack.c.l.b16 %v990
    %v1087 = vunpack.c.l.b16 %v991
    %v1088 = vunpack.c.l.b16 %v992
    %v1089 = vunpack.c.l.b16 %v993
    %v1090 = vunpack.c.l.b16 %v994
    %v1091 = vunpack.c.l.b16 %v995
    %v1092 = vunpack.c.l.b16 %v996
    %v1093 = vunpack.c.l.b16 %v997
    %v1094 = vunpack.c.l.b16 %v998
    %v1095 = vunpack.c.l.b16 %v999
    %v1096 = vunpack.c.l.b16 %v1000
    %v1097 = vunpack.c.l.b16 %v1001
    %v1098 = vunpack.c.l.b16 %v1002
    %v1099 = vunpack.c.l.b16 %v1003
    %v1100 = vunpack.c.l.b16 %v1004
    %v1101 = vunpack.c.l.b16 %v1005
    %v1102 = vunpack.c.l.b16 %v1006
    %v1103 = vunpack.c.l.b16 %v1007
    %v1104 = vunpack.c.l.b16 %v1008
    %v1105 = vunpack.c.l.b16 %v1009
    %v1106 = vunpack.c.l.b16 %v1010
    %v1107 = vunpack.c.l.b16 %v1011
    %v1108 = vunpack.c.l.b16 %v1012
    %v1109 = vunpack.c.l.b16 %v1013
    %v1110 = vunpack.c.l.b16 %v1014
    %v1111 = vunpack.c.l.b16 %v1015
    %v1112 = vpack.c.b16 %v1081, %v1080
    %v1113 = vpack.c.b16 %v1083, %v1082
    %v1114 = vpack.c.b16 %v1085, %v1084
    %v1115 = vpack.c.b16 %v1087, %v1086
    %v1116 = vpack.c.b16 %v1089, %v1088
    %v1117 = vpack.c.b16 %v1091, %v1090
    %v1118 = vpack.c.b16 %v1093, %v1092
    %v1119 = vpack.c.b16 %v1095, %v1094
    %v1120 = vpack.c.b16 %v1097, %v1096
    %v1121 = vpack.c.b16 %v1099, %v1098
    %v1122 = vpack.c.b16 %v1101, %v1100
    %v1123 = vpack.c.b16 %v1103, %v1102
    %v1124 = vpack.c.b16 %v1105, %v1104
    %v1125 = vpack.c.b16 %v1107, %v1106
    %v1126 = vpack.c.b16 %v1109, %v1108
    %v1127 = vpack.c.b16 %v1111, %v1110
    %1144 = vmatprep.subr.bf16.mxu0 0
    %1145 = vmatpush1.bf16.msra.mxu0 %v1119
    %1146 = vmatprep.subr.bf16.mxu0 0
    %1147 = vmatpush1.bf16.msra.mxu0 %v1118
    %1148 = vmatprep.subr.bf16.mxu0 0
    %1149 = vmatpush1.bf16.msra.mxu0 %v1117
    %1150 = vmatprep.subr.bf16.mxu0 0
    %1151 = vmatpush1.bf16.msra.mxu0 %v1116
    %1152 = vmatprep.subr.bf16.mxu0 0
    %1153 = vmatpush1.bf16.msra.mxu0 %v1115
    %1154 = vmatprep.subr.bf16.mxu0 0
    %1155 = vmatpush1.bf16.msra.mxu0 %v1114
    %1156 = vmatprep.subr.bf16.mxu0 0
    %1157 = vmatpush1.bf16.msra.mxu0 %v1113
    %1158 = vmatprep.subr.bf16.mxu0 0
    %1159 = vmatpush1.bf16.msra.mxu0 %v1112
    %1160 = vmatprep.subr.bf16.mxu0 0
    %1161 = vmatpush2.bf16.msra.mxu0 %v1127
    %1162 = vmatprep.subr.bf16.mxu0 0
    %1163 = vmatpush2.bf16.msra.mxu0 %v1126
    %1164 = vmatprep.subr.bf16.mxu0 0
    %1165 = vmatpush2.bf16.msra.mxu0 %v1125
    %1166 = vmatprep.subr.bf16.mxu0 0
    %1167 = vmatpush2.bf16.msra.mxu0 %v1124
    %1168 = vmatprep.subr.bf16.mxu0 0
    %1169 = vmatpush2.bf16.msra.mxu0 %v1123
    %1170 = vmatprep.subr.bf16.mxu0 0
    %1171 = vmatpush2.bf16.msra.mxu0 %v1122
    %1172 = vmatprep.subr.bf16.mxu0 0
    %1173 = vmatpush2.bf16.msra.mxu0 %v1121
    %1174 = vmatprep.subr.bf16.mxu0 0
    %1175 = vmatpush2.bf16.msra.mxu0 %v1120
    %1176 = vmatprep.mubr.bf16.mxu0 %v1017
    %1177 = vmatmul.mubr.bf16.gmra.mxu0 %v1016
    %v1178 = vpop.f32.mrf.mxu0
    %v1179 = vadd.f32 0.0, %v1178
    %v1180 = vpop.f32.mrf.mxu0
    %v1181 = vpop.f32.mrf.mxu0
    %v1182 = vadd.f32 0.0, %v1181
    %v1183 = vpop.f32.mrf.mxu0
    %1184 = vmatprep.mubr.bf16.mxu0 %v1019
    %1185 = vmatmul.mubr.bf16.gmra.mxu0 %v1018
    %v1186 = vpop.f32.mrf.mxu0
    %v1187 = vadd.f32 0.0, %v1186
    %v1188 = vpop.f32.mrf.mxu0
    %v1189 = vpop.f32.mrf.mxu0
    %v1190 = vadd.f32 0.0, %v1189
    %v1191 = vpop.f32.mrf.mxu0
    %1192 = vmatprep.mubr.bf16.mxu0 %v1021
    %1193 = vmatmul.mubr.bf16.gmra.mxu0 %v1020
    %v1194 = vpop.f32.mrf.mxu0
    %v1195 = vadd.f32 0.0, %v1194
    %v1196 = vpop.f32.mrf.mxu0
    %v1197 = vpop.f32.mrf.mxu0
    %v1198 = vadd.f32 0.0, %v1197
    %v1199 = vpop.f32.mrf.mxu0
    %1200 = vmatprep.mubr.bf16.mxu0 %v1023
    %1201 = vmatmul.mubr.bf16.gmra.mxu0 %v1022
    %v1202 = vpop.f32.mrf.mxu0
    %v1203 = vadd.f32 0.0, %v1202
    %v1204 = vpop.f32.mrf.mxu0
    %v1205 = vpop.f32.mrf.mxu0
    %v1206 = vadd.f32 0.0, %v1205
    %v1207 = vpop.f32.mrf.mxu0
    %1208 = vmatprep.mubr.bf16.mxu0 %v1025
    %1209 = vmatmul.mubr.bf16.gmra.mxu0 %v1024
    %v1210 = vpop.f32.mrf.mxu0
    %v1211 = vadd.f32 0.0, %v1210
    %v1212 = vpop.f32.mrf.mxu0
    %v1213 = vpop.f32.mrf.mxu0
    %v1214 = vadd.f32 0.0, %v1213
    %v1215 = vpop.f32.mrf.mxu0
    %1216 = vmatprep.mubr.bf16.mxu0 %v1027
    %1217 = vmatmul.mubr.bf16.gmra.mxu0 %v1026
    %v1218 = vpop.f32.mrf.mxu0
    %v1219 = vadd.f32 0.0, %v1218
    %v1220 = vpop.f32.mrf.mxu0
    %v1221 = vpop.f32.mrf.mxu0
    %v1222 = vadd.f32 0.0, %v1221
    %v1223 = vpop.f32.mrf.mxu0
    %1224 = vmatprep.mubr.bf16.mxu0 %v1029
    %1225 = vmatmul.mubr.bf16.gmra.mxu0 %v1028
    %v1226 = vpop.f32.mrf.mxu0
    %v1227 = vadd.f32 0.0, %v1226
    %v1228 = vpop.f32.mrf.mxu0
    %v1229 = vpop.f32.mrf.mxu0
    %v1230 = vadd.f32 0.0, %v1229
    %v1231 = vpop.f32.mrf.mxu0
    %1232 = vmatprep.mubr.bf16.mxu0 %v1031
    %1233 = vmatmul.mubr.bf16.gmra.mxu0 %v1030
    %v1234 = vpop.f32.mrf.mxu0
    %v1235 = vadd.f32 0.0, %v1234
    %v1236 = vpop.f32.mrf.mxu0
    %v1237 = vpop.f32.mrf.mxu0
    %v1238 = vadd.f32 0.0, %v1237
    %v1239 = vpop.f32.mrf.mxu0
    %1240 = vmatprep.mubr.bf16.mxu0 %v1033
    %1241 = vmatmul.mubr.bf16.gmra.mxu0 %v1032
    %v1242 = vpop.f32.mrf.mxu0
    %v1243 = vadd.f32 0.0, %v1242
    %v1244 = vpop.f32.mrf.mxu0
    %v1245 = vpop.f32.mrf.mxu0
    %v1246 = vadd.f32 0.0, %v1245
    %v1247 = vpop.f32.mrf.mxu0
    %1248 = vmatprep.mubr.bf16.mxu0 %v1035
    %1249 = vmatmul.mubr.bf16.gmra.mxu0 %v1034
    %v1250 = vpop.f32.mrf.mxu0
    %v1251 = vadd.f32 0.0, %v1250
    %v1252 = vpop.f32.mrf.mxu0
    %v1253 = vpop.f32.mrf.mxu0
    %v1254 = vadd.f32 0.0, %v1253
    %v1255 = vpop.f32.mrf.mxu0
    %1256 = vmatprep.mubr.bf16.mxu0 %v1037
    %1257 = vmatmul.mubr.bf16.gmra.mxu0 %v1036
    %v1258 = vpop.f32.mrf.mxu0
    %v1259 = vadd.f32 0.0, %v1258
    %v1260 = vpop.f32.mrf.mxu0
    %v1261 = vpop.f32.mrf.mxu0
    %v1262 = vadd.f32 0.0, %v1261
    %v1263 = vpop.f32.mrf.mxu0
    %1264 = vmatprep.mubr.bf16.mxu0 %v1039
    %1265 = vmatmul.mubr.bf16.gmra.mxu0 %v1038
    %v1266 = vpop.f32.mrf.mxu0
    %v1267 = vadd.f32 0.0, %v1266
    %v1268 = vpop.f32.mrf.mxu0
    %v1269 = vpop.f32.mrf.mxu0
    %v1270 = vadd.f32 0.0, %v1269
    %v1271 = vpop.f32.mrf.mxu0
    %1272 = vmatprep.mubr.bf16.mxu0 %v1041
    %1273 = vmatmul.mubr.bf16.gmra.mxu0 %v1040
    %v1274 = vpop.f32.mrf.mxu0
    %v1275 = vadd.f32 0.0, %v1274
    %v1276 = vpop.f32.mrf.mxu0
    %v1277 = vpop.f32.mrf.mxu0
    %v1278 = vadd.f32 0.0, %v1277
    %v1279 = vpop.f32.mrf.mxu0
    %1280 = vmatprep.mubr.bf16.mxu0 %v1043
    %1281 = vmatmul.mubr.bf16.gmra.mxu0 %v1042
    %v1282 = vpop.f32.mrf.mxu0
    %v1283 = vadd.f32 0.0, %v1282
    %v1284 = vpop.f32.mrf.mxu0
    %v1285 = vpop.f32.mrf.mxu0
    %v1286 = vadd.f32 0.0, %v1285
    %v1287 = vpop.f32.mrf.mxu0
    %1288 = vmatprep.mubr.bf16.mxu0 %v1045
    %1289 = vmatmul.mubr.bf16.gmra.mxu0 %v1044
    %v1290 = vpop.f32.mrf.mxu0
    %v1291 = vadd.f32 0.0, %v1290
    %v1292 = vpop.f32.mrf.mxu0
    %v1293 = vpop.f32.mrf.mxu0
    %v1294 = vadd.f32 0.0, %v1293
    %v1295 = vpop.f32.mrf.mxu0
    %1296 = vmatprep.mubr.bf16.mxu0 %v1047
    %1297 = vmatmul.mubr.bf16.gmra.mxu0 %v1046
    %v1298 = vpop.f32.mrf.mxu0
    %v1299 = vadd.f32 0.0, %v1298
    %v1300 = vpop.f32.mrf.mxu0
    %v1301 = vpop.f32.mrf.mxu0
    %v1302 = vadd.f32 0.0, %v1301
    %v1303 = vpop.f32.mrf.mxu0
    %1304 = vdwg.mxu0
    %1305 = vset.pattern.permute.xlu0 2
    %1306 = vperm.xlu0 %1305, %v77
    %v1307 = vpop.permute.xlu0 %1306
    %1309 = vset.pattern.permute.xlu0 2
    %1310 = vperm.xlu0 %1309, %v78
    %v1311 = vpop.permute.xlu0 %1310
    %1313 = vset.pattern.permute.xlu0 2
    %1314 = vperm.xlu0 %1313, %v79
    %v1315 = vpop.permute.xlu0 %1314
    %1317 = vset.pattern.permute.xlu0 2
    %1318 = vperm.xlu0 %1317, %v80
    %v1319 = vpop.permute.xlu0 %1318
    %1321 = vset.pattern.permute.xlu0 2
    %1322 = vperm.xlu0 %1321, %v81
    %v1323 = vpop.permute.xlu0 %1322
    %1325 = vset.pattern.permute.xlu0 2
    %1326 = vperm.xlu0 %1325, %v82
    %v1327 = vpop.permute.xlu0 %1326
    %1329 = vset.pattern.permute.xlu0 2
    %1330 = vperm.xlu0 %1329, %v83
    %v1331 = vpop.permute.xlu0 %1330
    %1333 = vset.pattern.permute.xlu0 2
    %1334 = vperm.xlu0 %1333, %v84
    %v1335 = vpop.permute.xlu0 %1334
    %1337 = vset.pattern.permute.xlu0 2
    %1338 = vperm.xlu0 %1337, %v85
    %v1339 = vpop.permute.xlu0 %1338
    %1341 = vset.pattern.permute.xlu0 2
    %1342 = vperm.xlu0 %1341, %v86
    %v1343 = vpop.permute.xlu0 %1342
    %1345 = vset.pattern.permute.xlu0 2
    %1346 = vperm.xlu0 %1345, %v87
    %v1347 = vpop.permute.xlu0 %1346
    %1349 = vset.pattern.permute.xlu0 2
    %1350 = vperm.xlu0 %1349, %v88
    %v1351 = vpop.permute.xlu0 %1350
    %1353 = vset.pattern.permute.xlu0 2
    %1354 = vperm.xlu0 %1353, %v89
    %v1355 = vpop.permute.xlu0 %1354
    %1357 = vset.pattern.permute.xlu0 2
    %1358 = vperm.xlu0 %1357, %v90
    %v1359 = vpop.permute.xlu0 %1358
    %1361 = vset.pattern.permute.xlu0 2
    %1362 = vperm.xlu0 %1361, %v91
    %v1363 = vpop.permute.xlu0 %1362
    %1365 = vset.pattern.permute.xlu0 2
    %1366 = vperm.xlu0 %1365, %v92
    %v1367 = vpop.permute.xlu0 %1366
    %1369 = vset.pattern.permute.xlu0 2
    %1370 = vperm.xlu0 %1369, %v93
    %v1371 = vpop.permute.xlu0 %1370
    %1373 = vset.pattern.permute.xlu0 2
    %1374 = vperm.xlu0 %1373, %v94
    %v1375 = vpop.permute.xlu0 %1374
    %1377 = vset.pattern.permute.xlu0 2
    %1378 = vperm.xlu0 %1377, %v95
    %v1379 = vpop.permute.xlu0 %1378
    %1381 = vset.pattern.permute.xlu0 2
    %1382 = vperm.xlu0 %1381, %v96
    %v1383 = vpop.permute.xlu0 %1382
    %1385 = vset.pattern.permute.xlu0 2
    %1386 = vperm.xlu0 %1385, %v97
    %v1387 = vpop.permute.xlu0 %1386
    %1389 = vset.pattern.permute.xlu0 2
    %1390 = vperm.xlu0 %1389, %v98
    %v1391 = vpop.permute.xlu0 %1390
    %1393 = vset.pattern.permute.xlu0 2
    %1394 = vperm.xlu0 %1393, %v99
    %v1395 = vpop.permute.xlu0 %1394
    %1397 = vset.pattern.permute.xlu0 2
    %1398 = vperm.xlu0 %1397, %v100
    %v1399 = vpop.permute.xlu0 %1398
    %1401 = vset.pattern.permute.xlu0 2
    %1402 = vperm.xlu0 %1401, %v101
    %v1403 = vpop.permute.xlu0 %1402
    %1405 = vset.pattern.permute.xlu0 2
    %1406 = vperm.xlu0 %1405, %v102
    %v1407 = vpop.permute.xlu0 %1406
    %1409 = vset.pattern.permute.xlu0 2
    %1410 = vperm.xlu0 %1409, %v103
    %v1411 = vpop.permute.xlu0 %1410
    %1413 = vset.pattern.permute.xlu0 2
    %1414 = vperm.xlu0 %1413, %v104
    %v1415 = vpop.permute.xlu0 %1414
    %1417 = vset.pattern.permute.xlu0 2
    %1418 = vperm.xlu0 %1417, %v105
    %v1419 = vpop.permute.xlu0 %1418
    %1421 = vset.pattern.permute.xlu0 2
    %1422 = vperm.xlu0 %1421, %v106
    %v1423 = vpop.permute.xlu0 %1422
    %1425 = vset.pattern.permute.xlu0 2
    %1426 = vperm.xlu0 %1425, %v107
    %v1427 = vpop.permute.xlu0 %1426
    %1429 = vset.pattern.permute.xlu0 2
    %1430 = vperm.xlu0 %1429, %v108
    %v1431 = vpop.permute.xlu0 %1430
    %v1433 = vsub.f32 %v1307, %v118
    %v1434 = vsub.f32 %v1307, %v119
    %v1435 = vsub.f32 %v1311, %v118
    %v1436 = vsub.f32 %v1311, %v119
    %v1437 = vsub.f32 %v1315, %v118
    %v1438 = vsub.f32 %v1315, %v119
    %v1439 = vsub.f32 %v1319, %v118
    %v1440 = vsub.f32 %v1319, %v119
    %v1441 = vsub.f32 %v1323, %v118
    %v1442 = vsub.f32 %v1323, %v119
    %v1443 = vsub.f32 %v1327, %v118
    %v1444 = vsub.f32 %v1327, %v119
    %v1445 = vsub.f32 %v1331, %v118
    %v1446 = vsub.f32 %v1331, %v119
    %v1447 = vsub.f32 %v1335, %v118
    %v1448 = vsub.f32 %v1335, %v119
    %v1449 = vsub.f32 %v1339, %v118
    %v1450 = vsub.f32 %v1339, %v119
    %v1451 = vsub.f32 %v1343, %v118
    %v1452 = vsub.f32 %v1343, %v119
    %v1453 = vsub.f32 %v1347, %v118
    %v1454 = vsub.f32 %v1347, %v119
    %v1455 = vsub.f32 %v1351, %v118
    %v1456 = vsub.f32 %v1351, %v119
    %v1457 = vsub.f32 %v1355, %v118
    %v1458 = vsub.f32 %v1355, %v119
    %v1459 = vsub.f32 %v1359, %v118
    %v1460 = vsub.f32 %v1359, %v119
    %v1461 = vsub.f32 %v1363, %v118
    %v1462 = vsub.f32 %v1363, %v119
    %v1463 = vsub.f32 %v1367, %v118
    %v1464 = vsub.f32 %v1367, %v119
    %v1465 = vsub.f32 %v1371, %v118
    %v1466 = vsub.f32 %v1371, %v119
    %v1467 = vsub.f32 %v1375, %v118
    %v1468 = vsub.f32 %v1375, %v119
    %v1469 = vsub.f32 %v1379, %v118
    %v1470 = vsub.f32 %v1379, %v119
    %v1471 = vsub.f32 %v1383, %v118
    %v1472 = vsub.f32 %v1383, %v119
    %v1473 = vsub.f32 %v1387, %v118
    %v1474 = vsub.f32 %v1387, %v119
    %v1475 = vsub.f32 %v1391, %v118
    %v1476 = vsub.f32 %v1391, %v119
    %v1477 = vsub.f32 %v1395, %v118
    %v1478 = vsub.f32 %v1395, %v119
    %v1479 = vsub.f32 %v1399, %v118
    %v1480 = vsub.f32 %v1399, %v119
    %v1481 = vsub.f32 %v1403, %v118
    %v1482 = vsub.f32 %v1403, %v119
    %v1483 = vsub.f32 %v1407, %v118
    %v1484 = vsub.f32 %v1407, %v119
    %v1485 = vsub.f32 %v1411, %v118
    %v1486 = vsub.f32 %v1411, %v119
    %v1487 = vsub.f32 %v1415, %v118
    %v1488 = vsub.f32 %v1415, %v119
    %v1489 = vsub.f32 %v1419, %v118
    %v1490 = vsub.f32 %v1419, %v119
    %v1491 = vsub.f32 %v1423, %v118
    %v1492 = vsub.f32 %v1423, %v119
    %v1493 = vsub.f32 %v1427, %v118
    %v1494 = vsub.f32 %v1427, %v119
    %v1495 = vsub.f32 %v1431, %v118
    %v1496 = vsub.f32 %v1431, %v119
    %v1497 = vand.u32 2147483647, %v1433
    %v1498 = vand.u32 2147483647, %v1434
    %v1499 = vand.u32 2147483647, %v1435
    %v1500 = vand.u32 2147483647, %v1436
    %v1501 = vand.u32 2147483647, %v1437
    %v1502 = vand.u32 2147483647, %v1438
    %v1503 = vand.u32 2147483647, %v1439
    %v1504 = vand.u32 2147483647, %v1440
    %v1505 = vand.u32 2147483647, %v1441
    %v1506 = vand.u32 2147483647, %v1442
    %v1507 = vand.u32 2147483647, %v1443
    %v1508 = vand.u32 2147483647, %v1444
    %v1509 = vand.u32 2147483647, %v1445
    %v1510 = vand.u32 2147483647, %v1446
    %v1511 = vand.u32 2147483647, %v1447
    %v1512 = vand.u32 2147483647, %v1448
    %v1513 = vand.u32 2147483647, %v1449
    %v1514 = vand.u32 2147483647, %v1450
    %v1515 = vand.u32 2147483647, %v1451
    %v1516 = vand.u32 2147483647, %v1452
    %v1517 = vand.u32 2147483647, %v1453
    %v1518 = vand.u32 2147483647, %v1454
    %v1519 = vand.u32 2147483647, %v1455
    %v1520 = vand.u32 2147483647, %v1456
    %v1521 = vand.u32 2147483647, %v1457
    %v1522 = vand.u32 2147483647, %v1458
    %v1523 = vand.u32 2147483647, %v1459
    %v1524 = vand.u32 2147483647, %v1460
    %v1525 = vand.u32 2147483647, %v1461
    %v1526 = vand.u32 2147483647, %v1462
    %v1527 = vand.u32 2147483647, %v1463
    %v1528 = vand.u32 2147483647, %v1464
    %v1529 = vand.u32 2147483647, %v1465
    %v1530 = vand.u32 2147483647, %v1466
    %v1531 = vand.u32 2147483647, %v1467
    %v1532 = vand.u32 2147483647, %v1468
    %v1533 = vand.u32 2147483647, %v1469
    %v1534 = vand.u32 2147483647, %v1470
    %v1535 = vand.u32 2147483647, %v1471
    %v1536 = vand.u32 2147483647, %v1472
    %v1537 = vand.u32 2147483647, %v1473
    %v1538 = vand.u32 2147483647, %v1474
    %v1539 = vand.u32 2147483647, %v1475
    %v1540 = vand.u32 2147483647, %v1476
    %v1541 = vand.u32 2147483647, %v1477
    %v1542 = vand.u32 2147483647, %v1478
    %v1543 = vand.u32 2147483647, %v1479
    %v1544 = vand.u32 2147483647, %v1480
    %v1545 = vand.u32 2147483647, %v1481
    %v1546 = vand.u32 2147483647, %v1482
    %v1547 = vand.u32 2147483647, %v1483
    %v1548 = vand.u32 2147483647, %v1484
    %v1549 = vand.u32 2147483647, %v1485
    %v1550 = vand.u32 2147483647, %v1486
    %v1551 = vand.u32 2147483647, %v1487
    %v1552 = vand.u32 2147483647, %v1488
    %v1553 = vand.u32 2147483647, %v1489
    %v1554 = vand.u32 2147483647, %v1490
    %v1555 = vand.u32 2147483647, %v1491
    %v1556 = vand.u32 2147483647, %v1492
    %v1557 = vand.u32 2147483647, %v1493
    %v1558 = vand.u32 2147483647, %v1494
    %v1559 = vand.u32 2147483647, %v1495
    %v1560 = vand.u32 2147483647, %v1496
    %v1561 = vsub.f32 1.0, %v1497
    %v1562 = vsub.f32 1.0, %v1498
    %v1563 = vsub.f32 1.0, %v1499
    %v1564 = vsub.f32 1.0, %v1500
    %v1565 = vsub.f32 1.0, %v1501
    %v1566 = vsub.f32 1.0, %v1502
    %v1567 = vsub.f32 1.0, %v1503
    %v1568 = vsub.f32 1.0, %v1504
    %v1569 = vsub.f32 1.0, %v1505
    %v1570 = vsub.f32 1.0, %v1506
    %v1571 = vsub.f32 1.0, %v1507
    %v1572 = vsub.f32 1.0, %v1508
    %v1573 = vsub.f32 1.0, %v1509
    %v1574 = vsub.f32 1.0, %v1510
    %v1575 = vsub.f32 1.0, %v1511
    %v1576 = vsub.f32 1.0, %v1512
    %v1577 = vsub.f32 1.0, %v1513
    %v1578 = vsub.f32 1.0, %v1514
    %v1579 = vsub.f32 1.0, %v1515
    %v1580 = vsub.f32 1.0, %v1516
    %v1581 = vsub.f32 1.0, %v1517
    %v1582 = vsub.f32 1.0, %v1518
    %v1583 = vsub.f32 1.0, %v1519
    %v1584 = vsub.f32 1.0, %v1520
    %v1585 = vsub.f32 1.0, %v1521
    %v1586 = vsub.f32 1.0, %v1522
    %v1587 = vsub.f32 1.0, %v1523
    %v1588 = vsub.f32 1.0, %v1524
    %v1589 = vsub.f32 1.0, %v1525
    %v1590 = vsub.f32 1.0, %v1526
    %v1591 = vsub.f32 1.0, %v1527
    %v1592 = vsub.f32 1.0, %v1528
    %v1593 = vsub.f32 1.0, %v1529
    %v1594 = vsub.f32 1.0, %v1530
    %v1595 = vsub.f32 1.0, %v1531
    %v1596 = vsub.f32 1.0, %v1532
    %v1597 = vsub.f32 1.0, %v1533
    %v1598 = vsub.f32 1.0, %v1534
    %v1599 = vsub.f32 1.0, %v1535
    %v1600 = vsub.f32 1.0, %v1536
    %v1601 = vsub.f32 1.0, %v1537
    %v1602 = vsub.f32 1.0, %v1538
    %v1603 = vsub.f32 1.0, %v1539
    %v1604 = vsub.f32 1.0, %v1540
    %v1605 = vsub.f32 1.0, %v1541
    %v1606 = vsub.f32 1.0, %v1542
    %v1607 = vsub.f32 1.0, %v1543
    %v1608 = vsub.f32 1.0, %v1544
    %v1609 = vsub.f32 1.0, %v1545
    %v1610 = vsub.f32 1.0, %v1546
    %v1611 = vsub.f32 1.0, %v1547
    %v1612 = vsub.f32 1.0, %v1548
    %v1613 = vsub.f32 1.0, %v1549
    %v1614 = vsub.f32 1.0, %v1550
    %v1615 = vsub.f32 1.0, %v1551
    %v1616 = vsub.f32 1.0, %v1552
    %v1617 = vsub.f32 1.0, %v1553
    %v1618 = vsub.f32 1.0, %v1554
    %v1619 = vsub.f32 1.0, %v1555
    %v1620 = vsub.f32 1.0, %v1556
    %v1621 = vsub.f32 1.0, %v1557
    %v1622 = vsub.f32 1.0, %v1558
    %v1623 = vsub.f32 1.0, %v1559
    %v1624 = vsub.f32 1.0, %v1560
    %v1625 = vmax.f32 %v1561, 0.0
    %v1626 = vmax.f32 %v1562, 0.0
    %v1627 = vmax.f32 %v1563, 0.0
    %v1628 = vmax.f32 %v1564, 0.0
    %v1629 = vmax.f32 %v1565, 0.0
    %v1630 = vmax.f32 %v1566, 0.0
    %v1631 = vmax.f32 %v1567, 0.0
    %v1632 = vmax.f32 %v1568, 0.0
    %v1633 = vmax.f32 %v1569, 0.0
    %v1634 = vmax.f32 %v1570, 0.0
    %v1635 = vmax.f32 %v1571, 0.0
    %v1636 = vmax.f32 %v1572, 0.0
    %v1637 = vmax.f32 %v1573, 0.0
    %v1638 = vmax.f32 %v1574, 0.0
    %v1639 = vmax.f32 %v1575, 0.0
    %v1640 = vmax.f32 %v1576, 0.0
    %v1641 = vmax.f32 %v1577, 0.0
    %v1642 = vmax.f32 %v1578, 0.0
    %v1643 = vmax.f32 %v1579, 0.0
    %v1644 = vmax.f32 %v1580, 0.0
    %v1645 = vmax.f32 %v1581, 0.0
    %v1646 = vmax.f32 %v1582, 0.0
    %v1647 = vmax.f32 %v1583, 0.0
    %v1648 = vmax.f32 %v1584, 0.0
    %v1649 = vmax.f32 %v1585, 0.0
    %v1650 = vmax.f32 %v1586, 0.0
    %v1651 = vmax.f32 %v1587, 0.0
    %v1652 = vmax.f32 %v1588, 0.0
    %v1653 = vmax.f32 %v1589, 0.0
    %v1654 = vmax.f32 %v1590, 0.0
    %v1655 = vmax.f32 %v1591, 0.0
    %v1656 = vmax.f32 %v1592, 0.0
    %v1657 = vmax.f32 %v1593, 0.0
    %v1658 = vmax.f32 %v1594, 0.0
    %v1659 = vmax.f32 %v1595, 0.0
    %v1660 = vmax.f32 %v1596, 0.0
    %v1661 = vmax.f32 %v1597, 0.0
    %v1662 = vmax.f32 %v1598, 0.0
    %v1663 = vmax.f32 %v1599, 0.0
    %v1664 = vmax.f32 %v1600, 0.0
    %v1665 = vmax.f32 %v1601, 0.0
    %v1666 = vmax.f32 %v1602, 0.0
    %v1667 = vmax.f32 %v1603, 0.0
    %v1668 = vmax.f32 %v1604, 0.0
    %v1669 = vmax.f32 %v1605, 0.0
    %v1670 = vmax.f32 %v1606, 0.0
    %v1671 = vmax.f32 %v1607, 0.0
    %v1672 = vmax.f32 %v1608, 0.0
    %v1673 = vmax.f32 %v1609, 0.0
    %v1674 = vmax.f32 %v1610, 0.0
    %v1675 = vmax.f32 %v1611, 0.0
    %v1676 = vmax.f32 %v1612, 0.0
    %v1677 = vmax.f32 %v1613, 0.0
    %v1678 = vmax.f32 %v1614, 0.0
    %v1679 = vmax.f32 %v1615, 0.0
    %v1680 = vmax.f32 %v1616, 0.0
    %v1681 = vmax.f32 %v1617, 0.0
    %v1682 = vmax.f32 %v1618, 0.0
    %v1683 = vmax.f32 %v1619, 0.0
    %v1684 = vmax.f32 %v1620, 0.0
    %v1685 = vmax.f32 %v1621, 0.0
    %v1686 = vmax.f32 %v1622, 0.0
    %v1687 = vmax.f32 %v1623, 0.0
    %v1688 = vmax.f32 %v1624, 0.0
    %v1689 = vmul.f32 %v472, %v1625
    %v1690 = vmul.f32 %v473, %v1626
    %v1691 = vmul.f32 %v474, %v1627
    %v1692 = vmul.f32 %v475, %v1628
    %v1693 = vmul.f32 %v476, %v1629
    %v1694 = vmul.f32 %v477, %v1630
    %v1695 = vmul.f32 %v478, %v1631
    %v1696 = vmul.f32 %v479, %v1632
    %v1697 = vmul.f32 %v480, %v1633
    %v1698 = vmul.f32 %v481, %v1634
    %v1699 = vmul.f32 %v482, %v1635
    %v1700 = vmul.f32 %v483, %v1636
    %v1701 = vmul.f32 %v484, %v1637
    %v1702 = vmul.f32 %v485, %v1638
    %v1703 = vmul.f32 %v486, %v1639
    %v1704 = vmul.f32 %v487, %v1640
    %v1705 = vmul.f32 %v488, %v1641
    %v1706 = vmul.f32 %v489, %v1642
    %v1707 = vmul.f32 %v490, %v1643
    %v1708 = vmul.f32 %v491, %v1644
    %v1709 = vmul.f32 %v492, %v1645
    %v1710 = vmul.f32 %v493, %v1646
    %v1711 = vmul.f32 %v494, %v1647
    %v1712 = vmul.f32 %v495, %v1648
    %v1713 = vmul.f32 %v496, %v1649
    %v1714 = vmul.f32 %v497, %v1650
    %v1715 = vmul.f32 %v498, %v1651
    %v1716 = vmul.f32 %v499, %v1652
    %v1717 = vmul.f32 %v500, %v1653
    %v1718 = vmul.f32 %v501, %v1654
    %v1719 = vmul.f32 %v502, %v1655
    %v1720 = vmul.f32 %v503, %v1656
    %v1721 = vmul.f32 %v504, %v1657
    %v1722 = vmul.f32 %v505, %v1658
    %v1723 = vmul.f32 %v506, %v1659
    %v1724 = vmul.f32 %v507, %v1660
    %v1725 = vmul.f32 %v508, %v1661
    %v1726 = vmul.f32 %v509, %v1662
    %v1727 = vmul.f32 %v510, %v1663
    %v1728 = vmul.f32 %v511, %v1664
    %v1729 = vmul.f32 %v512, %v1665
    %v1730 = vmul.f32 %v513, %v1666
    %v1731 = vmul.f32 %v514, %v1667
    %v1732 = vmul.f32 %v515, %v1668
    %v1733 = vmul.f32 %v516, %v1669
    %v1734 = vmul.f32 %v517, %v1670
    %v1735 = vmul.f32 %v518, %v1671
    %v1736 = vmul.f32 %v519, %v1672
    %v1737 = vmul.f32 %v520, %v1673
    %v1738 = vmul.f32 %v521, %v1674
    %v1739 = vmul.f32 %v522, %v1675
    %v1740 = vmul.f32 %v523, %v1676
    %v1741 = vmul.f32 %v524, %v1677
    %v1742 = vmul.f32 %v525, %v1678
    %v1743 = vmul.f32 %v526, %v1679
    %v1744 = vmul.f32 %v527, %v1680
    %v1745 = vmul.f32 %v528, %v1681
    %v1746 = vmul.f32 %v529, %v1682
    %v1747 = vmul.f32 %v530, %v1683
    %v1748 = vmul.f32 %v531, %v1684
    %v1749 = vmul.f32 %v532, %v1685
    %v1750 = vmul.f32 %v533, %v1686
    %v1751 = vmul.f32 %v534, %v1687
    %v1752 = vmul.f32 %v535, %v1688
    %s1753 = scalar_lea.vmem %s1, 128
    %v1754 = vld [vmem:[%s1753] sm:$0xf]
    %v1755 = vld [vmem:[%s1753 + $0x4] sm:$0xf]
    %v1756 = vld [vmem:[%s1753 + $0x8] sm:$0xf]
    %v1757 = vld [vmem:[%s1753 + $0xc] sm:$0xf]
    %v1758 = vld [vmem:[%s1753 + $0x10] sm:$0xf]
    %v1759 = vld [vmem:[%s1753 + $0x14] sm:$0xf]
    %v1760 = vld [vmem:[%s1753 + $0x18] sm:$0xf]
    %v1761 = vld [vmem:[%s1753 + $0x1c] sm:$0xf]
    %v1762 = vld [vmem:[%s1753 + $0x20] sm:$0xf]
    %v1763 = vld [vmem:[%s1753 + $0x24] sm:$0xf]
    %v1764 = vld [vmem:[%s1753 + $0x28] sm:$0xf]
    %v1765 = vld [vmem:[%s1753 + $0x2c] sm:$0xf]
    %v1766 = vld [vmem:[%s1753 + $0x30] sm:$0xf]
    %v1767 = vld [vmem:[%s1753 + $0x34] sm:$0xf]
    %v1768 = vld [vmem:[%s1753 + $0x38] sm:$0xf]
    %v1769 = vld [vmem:[%s1753 + $0x3c] sm:$0xf]
    %v1770 = vld [vmem:[%s1753 + $0x40] sm:$0xf]
    %v1771 = vld [vmem:[%s1753 + $0x44] sm:$0xf]
    %v1772 = vld [vmem:[%s1753 + $0x48] sm:$0xf]
    %v1773 = vld [vmem:[%s1753 + $0x4c] sm:$0xf]
    %v1774 = vld [vmem:[%s1753 + $0x50] sm:$0xf]
    %v1775 = vld [vmem:[%s1753 + $0x54] sm:$0xf]
    %v1776 = vld [vmem:[%s1753 + $0x58] sm:$0xf]
    %v1777 = vld [vmem:[%s1753 + $0x5c] sm:$0xf]
    %v1778 = vld [vmem:[%s1753 + $0x60] sm:$0xf]
    %v1779 = vld [vmem:[%s1753 + $0x64] sm:$0xf]
    %v1780 = vld [vmem:[%s1753 + $0x68] sm:$0xf]
    %v1781 = vld [vmem:[%s1753 + $0x6c] sm:$0xf]
    %v1782 = vld [vmem:[%s1753 + $0x70] sm:$0xf]
    %v1783 = vld [vmem:[%s1753 + $0x74] sm:$0xf]
    %v1784 = vld [vmem:[%s1753 + $0x78] sm:$0xf]
    %v1785 = vld [vmem:[%s1753 + $0x7c] sm:$0xf]
    %v1786 = vpack.c.bf16 %v1691, %v1689
    %v1787 = vpack.c.bf16 %v1692, %v1690
    %v1788 = vpack.c.bf16 %v1695, %v1693
    %v1789 = vpack.c.bf16 %v1696, %v1694
    %v1790 = vpack.c.bf16 %v1699, %v1697
    %v1791 = vpack.c.bf16 %v1700, %v1698
    %v1792 = vpack.c.bf16 %v1703, %v1701
    %v1793 = vpack.c.bf16 %v1704, %v1702
    %v1794 = vpack.c.bf16 %v1707, %v1705
    %v1795 = vpack.c.bf16 %v1708, %v1706
    %v1796 = vpack.c.bf16 %v1711, %v1709
    %v1797 = vpack.c.bf16 %v1712, %v1710
    %v1798 = vpack.c.bf16 %v1715, %v1713
    %v1799 = vpack.c.bf16 %v1716, %v1714
    %v1800 = vpack.c.bf16 %v1719, %v1717
    %v1801 = vpack.c.bf16 %v1720, %v1718
    %v1802 = vpack.c.bf16 %v1723, %v1721
    %v1803 = vpack.c.bf16 %v1724, %v1722
    %v1804 = vpack.c.bf16 %v1727, %v1725
    %v1805 = vpack.c.bf16 %v1728, %v1726
    %v1806 = vpack.c.bf16 %v1731, %v1729
    %v1807 = vpack.c.bf16 %v1732, %v1730
    %v1808 = vpack.c.bf16 %v1735, %v1733
    %v1809 = vpack.c.bf16 %v1736, %v1734
    %v1810 = vpack.c.bf16 %v1739, %v1737
    %v1811 = vpack.c.bf16 %v1740, %v1738
    %v1812 = vpack.c.bf16 %v1743, %v1741
    %v1813 = vpack.c.bf16 %v1744, %v1742
    %v1814 = vpack.c.bf16 %v1747, %v1745
    %v1815 = vpack.c.bf16 %v1748, %v1746
    %v1816 = vpack.c.bf16 %v1751, %v1749
    %v1817 = vpack.c.bf16 %v1752, %v1750
    %v1850 = vunpack.c.l.b16 %v1754
    %v1851 = vunpack.c.l.b16 %v1755
    %v1852 = vunpack.c.l.b16 %v1756
    %v1853 = vunpack.c.l.b16 %v1757
    %v1854 = vunpack.c.l.b16 %v1758
    %v1855 = vunpack.c.l.b16 %v1759
    %v1856 = vunpack.c.l.b16 %v1760
    %v1857 = vunpack.c.l.b16 %v1761
    %v1858 = vunpack.c.l.b16 %v1762
    %v1859 = vunpack.c.l.b16 %v1763
    %v1860 = vunpack.c.l.b16 %v1764
    %v1861 = vunpack.c.l.b16 %v1765
    %v1862 = vunpack.c.l.b16 %v1766
    %v1863 = vunpack.c.l.b16 %v1767
    %v1864 = vunpack.c.l.b16 %v1768
    %v1865 = vunpack.c.l.b16 %v1769
    %v1866 = vunpack.c.l.b16 %v1770
    %v1867 = vunpack.c.l.b16 %v1771
    %v1868 = vunpack.c.l.b16 %v1772
    %v1869 = vunpack.c.l.b16 %v1773
    %v1870 = vunpack.c.l.b16 %v1774
    %v1871 = vunpack.c.l.b16 %v1775
    %v1872 = vunpack.c.l.b16 %v1776
    %v1873 = vunpack.c.l.b16 %v1777
    %v1874 = vunpack.c.l.b16 %v1778
    %v1875 = vunpack.c.l.b16 %v1779
    %v1876 = vunpack.c.l.b16 %v1780
    %v1877 = vunpack.c.l.b16 %v1781
    %v1878 = vunpack.c.l.b16 %v1782
    %v1879 = vunpack.c.l.b16 %v1783
    %v1880 = vunpack.c.l.b16 %v1784
    %v1881 = vunpack.c.l.b16 %v1785
    %v1882 = vpack.c.b16 %v1851, %v1850
    %v1883 = vpack.c.b16 %v1853, %v1852
    %v1884 = vpack.c.b16 %v1855, %v1854
    %v1885 = vpack.c.b16 %v1857, %v1856
    %v1886 = vpack.c.b16 %v1859, %v1858
    %v1887 = vpack.c.b16 %v1861, %v1860
    %v1888 = vpack.c.b16 %v1863, %v1862
    %v1889 = vpack.c.b16 %v1865, %v1864
    %v1890 = vpack.c.b16 %v1867, %v1866
    %v1891 = vpack.c.b16 %v1869, %v1868
    %v1892 = vpack.c.b16 %v1871, %v1870
    %v1893 = vpack.c.b16 %v1873, %v1872
    %v1894 = vpack.c.b16 %v1875, %v1874
    %v1895 = vpack.c.b16 %v1877, %v1876
    %v1896 = vpack.c.b16 %v1879, %v1878
    %v1897 = vpack.c.b16 %v1881, %v1880
    %1914 = vmatprep.subr.bf16.mxu0 0
    %1915 = vmatpush1.bf16.msra.mxu0 %v1889
    %1916 = vmatprep.subr.bf16.mxu0 0
    %1917 = vmatpush1.bf16.msra.mxu0 %v1888
    %1918 = vmatprep.subr.bf16.mxu0 0
    %1919 = vmatpush1.bf16.msra.mxu0 %v1887
    %1920 = vmatprep.subr.bf16.mxu0 0
    %1921 = vmatpush1.bf16.msra.mxu0 %v1886
    %1922 = vmatprep.subr.bf16.mxu0 0
    %1923 = vmatpush1.bf16.msra.mxu0 %v1885
    %1924 = vmatprep.subr.bf16.mxu0 0
    %1925 = vmatpush1.bf16.msra.mxu0 %v1884
    %1926 = vmatprep.subr.bf16.mxu0 0
    %1927 = vmatpush1.bf16.msra.mxu0 %v1883
    %1928 = vmatprep.subr.bf16.mxu0 0
    %1929 = vmatpush1.bf16.msra.mxu0 %v1882
    %1930 = vmatprep.subr.bf16.mxu0 0
    %1931 = vmatpush2.bf16.msra.mxu0 %v1897
    %1932 = vmatprep.subr.bf16.mxu0 0
    %1933 = vmatpush2.bf16.msra.mxu0 %v1896
    %1934 = vmatprep.subr.bf16.mxu0 0
    %1935 = vmatpush2.bf16.msra.mxu0 %v1895
    %1936 = vmatprep.subr.bf16.mxu0 0
    %1937 = vmatpush2.bf16.msra.mxu0 %v1894
    %1938 = vmatprep.subr.bf16.mxu0 0
    %1939 = vmatpush2.bf16.msra.mxu0 %v1893
    %1940 = vmatprep.subr.bf16.mxu0 0
    %1941 = vmatpush2.bf16.msra.mxu0 %v1892
    %1942 = vmatprep.subr.bf16.mxu0 0
    %1943 = vmatpush2.bf16.msra.mxu0 %v1891
    %1944 = vmatprep.subr.bf16.mxu0 0
    %1945 = vmatpush2.bf16.msra.mxu0 %v1890
    %1946 = vmatprep.mubr.bf16.mxu0 %v1787
    %1947 = vmatmul.mubr.bf16.gmra.mxu0 %v1786
    %v1948 = vpop.f32.mrf.mxu0
    %v1949 = vadd.f32 0.0, %v1948
    %v1950 = vpop.f32.mrf.mxu0
    %v1951 = vpop.f32.mrf.mxu0
    %v1952 = vadd.f32 0.0, %v1951
    %v1953 = vpop.f32.mrf.mxu0
    %1954 = vmatprep.mubr.bf16.mxu0 %v1789
    %1955 = vmatmul.mubr.bf16.gmra.mxu0 %v1788
    %v1956 = vpop.f32.mrf.mxu0
    %v1957 = vadd.f32 0.0, %v1956
    %v1958 = vpop.f32.mrf.mxu0
    %v1959 = vpop.f32.mrf.mxu0
    %v1960 = vadd.f32 0.0, %v1959
    %v1961 = vpop.f32.mrf.mxu0
    %1962 = vmatprep.mubr.bf16.mxu0 %v1791
    %1963 = vmatmul.mubr.bf16.gmra.mxu0 %v1790
    %v1964 = vpop.f32.mrf.mxu0
    %v1965 = vadd.f32 0.0, %v1964
    %v1966 = vpop.f32.mrf.mxu0
    %v1967 = vpop.f32.mrf.mxu0
    %v1968 = vadd.f32 0.0, %v1967
    %v1969 = vpop.f32.mrf.mxu0
    %1970 = vmatprep.mubr.bf16.mxu0 %v1793
    %1971 = vmatmul.mubr.bf16.gmra.mxu0 %v1792
    %v1972 = vpop.f32.mrf.mxu0
    %v1973 = vadd.f32 0.0, %v1972
    %v1974 = vpop.f32.mrf.mxu0
    %v1975 = vpop.f32.mrf.mxu0
    %v1976 = vadd.f32 0.0, %v1975
    %v1977 = vpop.f32.mrf.mxu0
    %1978 = vmatprep.mubr.bf16.mxu0 %v1795
    %1979 = vmatmul.mubr.bf16.gmra.mxu0 %v1794
    %v1980 = vpop.f32.mrf.mxu0
    %v1981 = vadd.f32 0.0, %v1980
    %v1982 = vpop.f32.mrf.mxu0
    %v1983 = vpop.f32.mrf.mxu0
    %v1984 = vadd.f32 0.0, %v1983
    %v1985 = vpop.f32.mrf.mxu0
    %1986 = vmatprep.mubr.bf16.mxu0 %v1797
    %1987 = vmatmul.mubr.bf16.gmra.mxu0 %v1796
    %v1988 = vpop.f32.mrf.mxu0
    %v1989 = vadd.f32 0.0, %v1988
    %v1990 = vpop.f32.mrf.mxu0
    %v1991 = vpop.f32.mrf.mxu0
    %v1992 = vadd.f32 0.0, %v1991
    %v1993 = vpop.f32.mrf.mxu0
    %1994 = vmatprep.mubr.bf16.mxu0 %v1799
    %1995 = vmatmul.mubr.bf16.gmra.mxu0 %v1798
    %v1996 = vpop.f32.mrf.mxu0
    %v1997 = vadd.f32 0.0, %v1996
    %v1998 = vpop.f32.mrf.mxu0
    %v1999 = vpop.f32.mrf.mxu0
    %v2000 = vadd.f32 0.0, %v1999
    %v2001 = vpop.f32.mrf.mxu0
    %2002 = vmatprep.mubr.bf16.mxu0 %v1801
    %2003 = vmatmul.mubr.bf16.gmra.mxu0 %v1800
    %v2004 = vpop.f32.mrf.mxu0
    %v2005 = vadd.f32 0.0, %v2004
    %v2006 = vpop.f32.mrf.mxu0
    %v2007 = vpop.f32.mrf.mxu0
    %v2008 = vadd.f32 0.0, %v2007
    %v2009 = vpop.f32.mrf.mxu0
    %2010 = vmatprep.mubr.bf16.mxu0 %v1803
    %2011 = vmatmul.mubr.bf16.gmra.mxu0 %v1802
    %v2012 = vpop.f32.mrf.mxu0
    %v2013 = vadd.f32 0.0, %v2012
    %v2014 = vpop.f32.mrf.mxu0
    %v2015 = vpop.f32.mrf.mxu0
    %v2016 = vadd.f32 0.0, %v2015
    %v2017 = vpop.f32.mrf.mxu0
    %2018 = vmatprep.mubr.bf16.mxu0 %v1805
    %2019 = vmatmul.mubr.bf16.gmra.mxu0 %v1804
    %v2020 = vpop.f32.mrf.mxu0
    %v2021 = vadd.f32 0.0, %v2020
    %v2022 = vpop.f32.mrf.mxu0
    %v2023 = vpop.f32.mrf.mxu0
    %v2024 = vadd.f32 0.0, %v2023
    %v2025 = vpop.f32.mrf.mxu0
    %2026 = vmatprep.mubr.bf16.mxu0 %v1807
    %2027 = vmatmul.mubr.bf16.gmra.mxu0 %v1806
    %v2028 = vpop.f32.mrf.mxu0
    %v2029 = vadd.f32 0.0, %v2028
    %v2030 = vpop.f32.mrf.mxu0
    %v2031 = vpop.f32.mrf.mxu0
    %v2032 = vadd.f32 0.0, %v2031
    %v2033 = vpop.f32.mrf.mxu0
    %2034 = vmatprep.mubr.bf16.mxu0 %v1809
    %2035 = vmatmul.mubr.bf16.gmra.mxu0 %v1808
    %v2036 = vpop.f32.mrf.mxu0
    %v2037 = vadd.f32 0.0, %v2036
    %v2038 = vpop.f32.mrf.mxu0
    %v2039 = vpop.f32.mrf.mxu0
    %v2040 = vadd.f32 0.0, %v2039
    %v2041 = vpop.f32.mrf.mxu0
    %2042 = vmatprep.mubr.bf16.mxu0 %v1811
    %2043 = vmatmul.mubr.bf16.gmra.mxu0 %v1810
    %v2044 = vpop.f32.mrf.mxu0
    %v2045 = vadd.f32 0.0, %v2044
    %v2046 = vpop.f32.mrf.mxu0
    %v2047 = vpop.f32.mrf.mxu0
    %v2048 = vadd.f32 0.0, %v2047
    %v2049 = vpop.f32.mrf.mxu0
    %2050 = vmatprep.mubr.bf16.mxu0 %v1813
    %2051 = vmatmul.mubr.bf16.gmra.mxu0 %v1812
    %v2052 = vpop.f32.mrf.mxu0
    %v2053 = vadd.f32 0.0, %v2052
    %v2054 = vpop.f32.mrf.mxu0
    %v2055 = vpop.f32.mrf.mxu0
    %v2056 = vadd.f32 0.0, %v2055
    %v2057 = vpop.f32.mrf.mxu0
    %2058 = vmatprep.mubr.bf16.mxu0 %v1815
    %2059 = vmatmul.mubr.bf16.gmra.mxu0 %v1814
    %v2060 = vpop.f32.mrf.mxu0
    %v2061 = vadd.f32 0.0, %v2060
    %v2062 = vpop.f32.mrf.mxu0
    %v2063 = vpop.f32.mrf.mxu0
    %v2064 = vadd.f32 0.0, %v2063
    %v2065 = vpop.f32.mrf.mxu0
    %2066 = vmatprep.mubr.bf16.mxu0 %v1817
    %2067 = vmatmul.mubr.bf16.gmra.mxu0 %v1816
    %v2068 = vpop.f32.mrf.mxu0
    %v2069 = vadd.f32 0.0, %v2068
    %v2070 = vpop.f32.mrf.mxu0
    %v2071 = vpop.f32.mrf.mxu0
    %v2072 = vadd.f32 0.0, %v2071
    %v2073 = vpop.f32.mrf.mxu0
    %2074 = vdwg.mxu0
    %v2075 = vsub.f32 %v1307, %v114
    %v2076 = vsub.f32 %v1307, %v115
    %v2077 = vsub.f32 %v1311, %v114
    %v2078 = vsub.f32 %v1311, %v115
    %v2079 = vsub.f32 %v1315, %v114
    %v2080 = vsub.f32 %v1315, %v115
    %v2081 = vsub.f32 %v1319, %v114
    %v2082 = vsub.f32 %v1319, %v115
    %v2083 = vsub.f32 %v1323, %v114
    %v2084 = vsub.f32 %v1323, %v115
    %v2085 = vsub.f32 %v1327, %v114
    %v2086 = vsub.f32 %v1327, %v115
    %v2087 = vsub.f32 %v1331, %v114
    %v2088 = vsub.f32 %v1331, %v115
    %v2089 = vsub.f32 %v1335, %v114
    %v2090 = vsub.f32 %v1335, %v115
    %v2091 = vsub.f32 %v1339, %v114
    %v2092 = vsub.f32 %v1339, %v115
    %v2093 = vsub.f32 %v1343, %v114
    %v2094 = vsub.f32 %v1343, %v115
    %v2095 = vsub.f32 %v1347, %v114
    %v2096 = vsub.f32 %v1347, %v115
    %v2097 = vsub.f32 %v1351, %v114
    %v2098 = vsub.f32 %v1351, %v115
    %v2099 = vsub.f32 %v1355, %v114
    %v2100 = vsub.f32 %v1355, %v115
    %v2101 = vsub.f32 %v1359, %v114
    %v2102 = vsub.f32 %v1359, %v115
    %v2103 = vsub.f32 %v1363, %v114
    %v2104 = vsub.f32 %v1363, %v115
    %v2105 = vsub.f32 %v1367, %v114
    %v2106 = vsub.f32 %v1367, %v115
    %v2107 = vsub.f32 %v1371, %v114
    %v2108 = vsub.f32 %v1371, %v115
    %v2109 = vsub.f32 %v1375, %v114
    %v2110 = vsub.f32 %v1375, %v115
    %v2111 = vsub.f32 %v1379, %v114
    %v2112 = vsub.f32 %v1379, %v115
    %v2113 = vsub.f32 %v1383, %v114
    %v2114 = vsub.f32 %v1383, %v115
    %v2115 = vsub.f32 %v1387, %v114
    %v2116 = vsub.f32 %v1387, %v115
    %v2117 = vsub.f32 %v1391, %v114
    %v2118 = vsub.f32 %v1391, %v115
    %v2119 = vsub.f32 %v1395, %v114
    %v2120 = vsub.f32 %v1395, %v115
    %v2121 = vsub.f32 %v1399, %v114
    %v2122 = vsub.f32 %v1399, %v115
    %v2123 = vsub.f32 %v1403, %v114
    %v2124 = vsub.f32 %v1403, %v115
    %v2125 = vsub.f32 %v1407, %v114
    %v2126 = vsub.f32 %v1407, %v115
    %v2127 = vsub.f32 %v1411, %v114
    %v2128 = vsub.f32 %v1411, %v115
    %v2129 = vsub.f32 %v1415, %v114
    %v2130 = vsub.f32 %v1415, %v115
    %v2131 = vsub.f32 %v1419, %v114
    %v2132 = vsub.f32 %v1419, %v115
    %v2133 = vsub.f32 %v1423, %v114
    %v2134 = vsub.f32 %v1423, %v115
    %v2135 = vsub.f32 %v1427, %v114
    %v2136 = vsub.f32 %v1427, %v115
    %v2137 = vsub.f32 %v1431, %v114
    %v2138 = vsub.f32 %v1431, %v115
    %v2139 = vand.u32 2147483647, %v2075
    %v2140 = vand.u32 2147483647, %v2076
    %v2141 = vand.u32 2147483647, %v2077
    %v2142 = vand.u32 2147483647, %v2078
    %v2143 = vand.u32 2147483647, %v2079
    %v2144 = vand.u32 2147483647, %v2080
    %v2145 = vand.u32 2147483647, %v2081
    %v2146 = vand.u32 2147483647, %v2082
    %v2147 = vand.u32 2147483647, %v2083
    %v2148 = vand.u32 2147483647, %v2084
    %v2149 = vand.u32 2147483647, %v2085
    %v2150 = vand.u32 2147483647, %v2086
    %v2151 = vand.u32 2147483647, %v2087
    %v2152 = vand.u32 2147483647, %v2088
    %v2153 = vand.u32 2147483647, %v2089
    %v2154 = vand.u32 2147483647, %v2090
    %v2155 = vand.u32 2147483647, %v2091
    %v2156 = vand.u32 2147483647, %v2092
    %v2157 = vand.u32 2147483647, %v2093
    %v2158 = vand.u32 2147483647, %v2094
    %v2159 = vand.u32 2147483647, %v2095
    %v2160 = vand.u32 2147483647, %v2096
    %v2161 = vand.u32 2147483647, %v2097
    %v2162 = vand.u32 2147483647, %v2098
    %v2163 = vand.u32 2147483647, %v2099
    %v2164 = vand.u32 2147483647, %v2100
    %v2165 = vand.u32 2147483647, %v2101
    %v2166 = vand.u32 2147483647, %v2102
    %v2167 = vand.u32 2147483647, %v2103
    %v2168 = vand.u32 2147483647, %v2104
    %v2169 = vand.u32 2147483647, %v2105
    %v2170 = vand.u32 2147483647, %v2106
    %v2171 = vand.u32 2147483647, %v2107
    %v2172 = vand.u32 2147483647, %v2108
    %v2173 = vand.u32 2147483647, %v2109
    %v2174 = vand.u32 2147483647, %v2110
    %v2175 = vand.u32 2147483647, %v2111
    %v2176 = vand.u32 2147483647, %v2112
    %v2177 = vand.u32 2147483647, %v2113
    %v2178 = vand.u32 2147483647, %v2114
    %v2179 = vand.u32 2147483647, %v2115
    %v2180 = vand.u32 2147483647, %v2116
    %v2181 = vand.u32 2147483647, %v2117
    %v2182 = vand.u32 2147483647, %v2118
    %v2183 = vand.u32 2147483647, %v2119
    %v2184 = vand.u32 2147483647, %v2120
    %v2185 = vand.u32 2147483647, %v2121
    %v2186 = vand.u32 2147483647, %v2122
    %v2187 = vand.u32 2147483647, %v2123
    %v2188 = vand.u32 2147483647, %v2124
    %v2189 = vand.u32 2147483647, %v2125
    %v2190 = vand.u32 2147483647, %v2126
    %v2191 = vand.u32 2147483647, %v2127
    %v2192 = vand.u32 2147483647, %v2128
    %v2193 = vand.u32 2147483647, %v2129
    %v2194 = vand.u32 2147483647, %v2130
    %v2195 = vand.u32 2147483647, %v2131
    %v2196 = vand.u32 2147483647, %v2132
    %v2197 = vand.u32 2147483647, %v2133
    %v2198 = vand.u32 2147483647, %v2134
    %v2199 = vand.u32 2147483647, %v2135
    %v2200 = vand.u32 2147483647, %v2136
    %v2201 = vand.u32 2147483647, %v2137
    %v2202 = vand.u32 2147483647, %v2138
    %v2203 = vsub.f32 1.0, %v2139
    %v2204 = vsub.f32 1.0, %v2140
    %v2205 = vsub.f32 1.0, %v2141
    %v2206 = vsub.f32 1.0, %v2142
    %v2207 = vsub.f32 1.0, %v2143
    %v2208 = vsub.f32 1.0, %v2144
    %v2209 = vsub.f32 1.0, %v2145
    %v2210 = vsub.f32 1.0, %v2146
    %v2211 = vsub.f32 1.0, %v2147
    %v2212 = vsub.f32 1.0, %v2148
    %v2213 = vsub.f32 1.0, %v2149
    %v2214 = vsub.f32 1.0, %v2150
    %v2215 = vsub.f32 1.0, %v2151
    %v2216 = vsub.f32 1.0, %v2152
    %v2217 = vsub.f32 1.0, %v2153
    %v2218 = vsub.f32 1.0, %v2154
    %v2219 = vsub.f32 1.0, %v2155
    %v2220 = vsub.f32 1.0, %v2156
    %v2221 = vsub.f32 1.0, %v2157
    %v2222 = vsub.f32 1.0, %v2158
    %v2223 = vsub.f32 1.0, %v2159
    %v2224 = vsub.f32 1.0, %v2160
    %v2225 = vsub.f32 1.0, %v2161
    %v2226 = vsub.f32 1.0, %v2162
    %v2227 = vsub.f32 1.0, %v2163
    %v2228 = vsub.f32 1.0, %v2164
    %v2229 = vsub.f32 1.0, %v2165
    %v2230 = vsub.f32 1.0, %v2166
    %v2231 = vsub.f32 1.0, %v2167
    %v2232 = vsub.f32 1.0, %v2168
    %v2233 = vsub.f32 1.0, %v2169
    %v2234 = vsub.f32 1.0, %v2170
    %v2235 = vsub.f32 1.0, %v2171
    %v2236 = vsub.f32 1.0, %v2172
    %v2237 = vsub.f32 1.0, %v2173
    %v2238 = vsub.f32 1.0, %v2174
    %v2239 = vsub.f32 1.0, %v2175
    %v2240 = vsub.f32 1.0, %v2176
    %v2241 = vsub.f32 1.0, %v2177
    %v2242 = vsub.f32 1.0, %v2178
    %v2243 = vsub.f32 1.0, %v2179
    %v2244 = vsub.f32 1.0, %v2180
    %v2245 = vsub.f32 1.0, %v2181
    %v2246 = vsub.f32 1.0, %v2182
    %v2247 = vsub.f32 1.0, %v2183
    %v2248 = vsub.f32 1.0, %v2184
    %v2249 = vsub.f32 1.0, %v2185
    %v2250 = vsub.f32 1.0, %v2186
    %v2251 = vsub.f32 1.0, %v2187
    %v2252 = vsub.f32 1.0, %v2188
    %v2253 = vsub.f32 1.0, %v2189
    %v2254 = vsub.f32 1.0, %v2190
    %v2255 = vsub.f32 1.0, %v2191
    %v2256 = vsub.f32 1.0, %v2192
    %v2257 = vsub.f32 1.0, %v2193
    %v2258 = vsub.f32 1.0, %v2194
    %v2259 = vsub.f32 1.0, %v2195
    %v2260 = vsub.f32 1.0, %v2196
    %v2261 = vsub.f32 1.0, %v2197
    %v2262 = vsub.f32 1.0, %v2198
    %v2263 = vsub.f32 1.0, %v2199
    %v2264 = vsub.f32 1.0, %v2200
    %v2265 = vsub.f32 1.0, %v2201
    %v2266 = vsub.f32 1.0, %v2202
    %v2267 = vmax.f32 %v2203, 0.0
    %v2268 = vmax.f32 %v2204, 0.0
    %v2269 = vmax.f32 %v2205, 0.0
    %v2270 = vmax.f32 %v2206, 0.0
    %v2271 = vmax.f32 %v2207, 0.0
    %v2272 = vmax.f32 %v2208, 0.0
    %v2273 = vmax.f32 %v2209, 0.0
    %v2274 = vmax.f32 %v2210, 0.0
    %v2275 = vmax.f32 %v2211, 0.0
    %v2276 = vmax.f32 %v2212, 0.0
    %v2277 = vmax.f32 %v2213, 0.0
    %v2278 = vmax.f32 %v2214, 0.0
    %v2279 = vmax.f32 %v2215, 0.0
    %v2280 = vmax.f32 %v2216, 0.0
    %v2281 = vmax.f32 %v2217, 0.0
    %v2282 = vmax.f32 %v2218, 0.0
    %v2283 = vmax.f32 %v2219, 0.0
    %v2284 = vmax.f32 %v2220, 0.0
    %v2285 = vmax.f32 %v2221, 0.0
    %v2286 = vmax.f32 %v2222, 0.0
    %v2287 = vmax.f32 %v2223, 0.0
    %v2288 = vmax.f32 %v2224, 0.0
    %v2289 = vmax.f32 %v2225, 0.0
    %v2290 = vmax.f32 %v2226, 0.0
    %v2291 = vmax.f32 %v2227, 0.0
    %v2292 = vmax.f32 %v2228, 0.0
    %v2293 = vmax.f32 %v2229, 0.0
    %v2294 = vmax.f32 %v2230, 0.0
    %v2295 = vmax.f32 %v2231, 0.0
    %v2296 = vmax.f32 %v2232, 0.0
    %v2297 = vmax.f32 %v2233, 0.0
    %v2298 = vmax.f32 %v2234, 0.0
    %v2299 = vmax.f32 %v2235, 0.0
    %v2300 = vmax.f32 %v2236, 0.0
    %v2301 = vmax.f32 %v2237, 0.0
    %v2302 = vmax.f32 %v2238, 0.0
    %v2303 = vmax.f32 %v2239, 0.0
    %v2304 = vmax.f32 %v2240, 0.0
    %v2305 = vmax.f32 %v2241, 0.0
    %v2306 = vmax.f32 %v2242, 0.0
    %v2307 = vmax.f32 %v2243, 0.0
    %v2308 = vmax.f32 %v2244, 0.0
    %v2309 = vmax.f32 %v2245, 0.0
    %v2310 = vmax.f32 %v2246, 0.0
    %v2311 = vmax.f32 %v2247, 0.0
    %v2312 = vmax.f32 %v2248, 0.0
    %v2313 = vmax.f32 %v2249, 0.0
    %v2314 = vmax.f32 %v2250, 0.0
    %v2315 = vmax.f32 %v2251, 0.0
    %v2316 = vmax.f32 %v2252, 0.0
    %v2317 = vmax.f32 %v2253, 0.0
    %v2318 = vmax.f32 %v2254, 0.0
    %v2319 = vmax.f32 %v2255, 0.0
    %v2320 = vmax.f32 %v2256, 0.0
    %v2321 = vmax.f32 %v2257, 0.0
    %v2322 = vmax.f32 %v2258, 0.0
    %v2323 = vmax.f32 %v2259, 0.0
    %v2324 = vmax.f32 %v2260, 0.0
    %v2325 = vmax.f32 %v2261, 0.0
    %v2326 = vmax.f32 %v2262, 0.0
    %v2327 = vmax.f32 %v2263, 0.0
    %v2328 = vmax.f32 %v2264, 0.0
    %v2329 = vmax.f32 %v2265, 0.0
    %v2330 = vmax.f32 %v2266, 0.0
    %v2331 = vmul.f32 %v2267, %v856
    %v2332 = vmul.f32 %v2268, %v857
    %v2333 = vmul.f32 %v2269, %v858
    %v2334 = vmul.f32 %v2270, %v859
    %v2335 = vmul.f32 %v2271, %v860
    %v2336 = vmul.f32 %v2272, %v861
    %v2337 = vmul.f32 %v2273, %v862
    %v2338 = vmul.f32 %v2274, %v863
    %v2339 = vmul.f32 %v2275, %v864
    %v2340 = vmul.f32 %v2276, %v865
    %v2341 = vmul.f32 %v2277, %v866
    %v2342 = vmul.f32 %v2278, %v867
    %v2343 = vmul.f32 %v2279, %v868
    %v2344 = vmul.f32 %v2280, %v869
    %v2345 = vmul.f32 %v2281, %v870
    %v2346 = vmul.f32 %v2282, %v871
    %v2347 = vmul.f32 %v2283, %v872
    %v2348 = vmul.f32 %v2284, %v873
    %v2349 = vmul.f32 %v2285, %v874
    %v2350 = vmul.f32 %v2286, %v875
    %v2351 = vmul.f32 %v2287, %v876
    %v2352 = vmul.f32 %v2288, %v877
    %v2353 = vmul.f32 %v2289, %v878
    %v2354 = vmul.f32 %v2290, %v879
    %v2355 = vmul.f32 %v2291, %v880
    %v2356 = vmul.f32 %v2292, %v881
    %v2357 = vmul.f32 %v2293, %v882
    %v2358 = vmul.f32 %v2294, %v883
    %v2359 = vmul.f32 %v2295, %v884
    %v2360 = vmul.f32 %v2296, %v885
    %v2361 = vmul.f32 %v2297, %v886
    %v2362 = vmul.f32 %v2298, %v887
    %v2363 = vmul.f32 %v2299, %v888
    %v2364 = vmul.f32 %v2300, %v889
    %v2365 = vmul.f32 %v2301, %v890
    %v2366 = vmul.f32 %v2302, %v891
    %v2367 = vmul.f32 %v2303, %v892
    %v2368 = vmul.f32 %v2304, %v893
    %v2369 = vmul.f32 %v2305, %v894
    %v2370 = vmul.f32 %v2306, %v895
    %v2371 = vmul.f32 %v2307, %v896
    %v2372 = vmul.f32 %v2308, %v897
    %v2373 = vmul.f32 %v2309, %v898
    %v2374 = vmul.f32 %v2310, %v899
    %v2375 = vmul.f32 %v2311, %v900
    %v2376 = vmul.f32 %v2312, %v901
    %v2377 = vmul.f32 %v2313, %v902
    %v2378 = vmul.f32 %v2314, %v903
    %v2379 = vmul.f32 %v2315, %v904
    %v2380 = vmul.f32 %v2316, %v905
    %v2381 = vmul.f32 %v2317, %v906
    %v2382 = vmul.f32 %v2318, %v907
    %v2383 = vmul.f32 %v2319, %v908
    %v2384 = vmul.f32 %v2320, %v909
    %v2385 = vmul.f32 %v2321, %v910
    %v2386 = vmul.f32 %v2322, %v911
    %v2387 = vmul.f32 %v2323, %v912
    %v2388 = vmul.f32 %v2324, %v913
    %v2389 = vmul.f32 %v2325, %v914
    %v2390 = vmul.f32 %v2326, %v915
    %v2391 = vmul.f32 %v2327, %v916
    %v2392 = vmul.f32 %v2328, %v917
    %v2393 = vmul.f32 %v2329, %v918
    %v2394 = vmul.f32 %v2330, %v919
    %s2395 = scalar_lea.vmem %s1, 256
    %v2396 = vld [vmem:[%s2395] sm:$0xf]
    %v2397 = vld [vmem:[%s2395 + $0x4] sm:$0xf]
    %v2398 = vld [vmem:[%s2395 + $0x8] sm:$0xf]
    %v2399 = vld [vmem:[%s2395 + $0xc] sm:$0xf]
    %v2400 = vld [vmem:[%s2395 + $0x10] sm:$0xf]
    %v2401 = vld [vmem:[%s2395 + $0x14] sm:$0xf]
    %v2402 = vld [vmem:[%s2395 + $0x18] sm:$0xf]
    %v2403 = vld [vmem:[%s2395 + $0x1c] sm:$0xf]
    %v2404 = vld [vmem:[%s2395 + $0x20] sm:$0xf]
    %v2405 = vld [vmem:[%s2395 + $0x24] sm:$0xf]
    %v2406 = vld [vmem:[%s2395 + $0x28] sm:$0xf]
    %v2407 = vld [vmem:[%s2395 + $0x2c] sm:$0xf]
    %v2408 = vld [vmem:[%s2395 + $0x30] sm:$0xf]
    %v2409 = vld [vmem:[%s2395 + $0x34] sm:$0xf]
    %v2410 = vld [vmem:[%s2395 + $0x38] sm:$0xf]
    %v2411 = vld [vmem:[%s2395 + $0x3c] sm:$0xf]
    %v2412 = vld [vmem:[%s2395 + $0x40] sm:$0xf]
    %v2413 = vld [vmem:[%s2395 + $0x44] sm:$0xf]
    %v2414 = vld [vmem:[%s2395 + $0x48] sm:$0xf]
    %v2415 = vld [vmem:[%s2395 + $0x4c] sm:$0xf]
    %v2416 = vld [vmem:[%s2395 + $0x50] sm:$0xf]
    %v2417 = vld [vmem:[%s2395 + $0x54] sm:$0xf]
    %v2418 = vld [vmem:[%s2395 + $0x58] sm:$0xf]
    %v2419 = vld [vmem:[%s2395 + $0x5c] sm:$0xf]
    %v2420 = vld [vmem:[%s2395 + $0x60] sm:$0xf]
    %v2421 = vld [vmem:[%s2395 + $0x64] sm:$0xf]
    %v2422 = vld [vmem:[%s2395 + $0x68] sm:$0xf]
    %v2423 = vld [vmem:[%s2395 + $0x6c] sm:$0xf]
    %v2424 = vld [vmem:[%s2395 + $0x70] sm:$0xf]
    %v2425 = vld [vmem:[%s2395 + $0x74] sm:$0xf]
    %v2426 = vld [vmem:[%s2395 + $0x78] sm:$0xf]
    %v2427 = vld [vmem:[%s2395 + $0x7c] sm:$0xf]
    %v2428 = vpack.c.bf16 %v2333, %v2331
    %v2429 = vpack.c.bf16 %v2334, %v2332
    %v2430 = vpack.c.bf16 %v2337, %v2335
    %v2431 = vpack.c.bf16 %v2338, %v2336
    %v2432 = vpack.c.bf16 %v2341, %v2339
    %v2433 = vpack.c.bf16 %v2342, %v2340
    %v2434 = vpack.c.bf16 %v2345, %v2343
    %v2435 = vpack.c.bf16 %v2346, %v2344
    %v2436 = vpack.c.bf16 %v2349, %v2347
    %v2437 = vpack.c.bf16 %v2350, %v2348
    %v2438 = vpack.c.bf16 %v2353, %v2351
    %v2439 = vpack.c.bf16 %v2354, %v2352
    %v2440 = vpack.c.bf16 %v2357, %v2355
    %v2441 = vpack.c.bf16 %v2358, %v2356
    %v2442 = vpack.c.bf16 %v2361, %v2359
    %v2443 = vpack.c.bf16 %v2362, %v2360
    %v2444 = vpack.c.bf16 %v2365, %v2363
    %v2445 = vpack.c.bf16 %v2366, %v2364
    %v2446 = vpack.c.bf16 %v2369, %v2367
    %v2447 = vpack.c.bf16 %v2370, %v2368
    %v2448 = vpack.c.bf16 %v2373, %v2371
    %v2449 = vpack.c.bf16 %v2374, %v2372
    %v2450 = vpack.c.bf16 %v2377, %v2375
    %v2451 = vpack.c.bf16 %v2378, %v2376
    %v2452 = vpack.c.bf16 %v2381, %v2379
    %v2453 = vpack.c.bf16 %v2382, %v2380
    %v2454 = vpack.c.bf16 %v2385, %v2383
    %v2455 = vpack.c.bf16 %v2386, %v2384
    %v2456 = vpack.c.bf16 %v2389, %v2387
    %v2457 = vpack.c.bf16 %v2390, %v2388
    %v2458 = vpack.c.bf16 %v2393, %v2391
    %v2459 = vpack.c.bf16 %v2394, %v2392
    %v2492 = vunpack.c.l.b16 %v2396
    %v2493 = vunpack.c.l.b16 %v2397
    %v2494 = vunpack.c.l.b16 %v2398
    %v2495 = vunpack.c.l.b16 %v2399
    %v2496 = vunpack.c.l.b16 %v2400
    %v2497 = vunpack.c.l.b16 %v2401
    %v2498 = vunpack.c.l.b16 %v2402
    %v2499 = vunpack.c.l.b16 %v2403
    %v2500 = vunpack.c.l.b16 %v2404
    %v2501 = vunpack.c.l.b16 %v2405
    %v2502 = vunpack.c.l.b16 %v2406
    %v2503 = vunpack.c.l.b16 %v2407
    %v2504 = vunpack.c.l.b16 %v2408
    %v2505 = vunpack.c.l.b16 %v2409
    %v2506 = vunpack.c.l.b16 %v2410
    %v2507 = vunpack.c.l.b16 %v2411
    %v2508 = vunpack.c.l.b16 %v2412
    %v2509 = vunpack.c.l.b16 %v2413
    %v2510 = vunpack.c.l.b16 %v2414
    %v2511 = vunpack.c.l.b16 %v2415
    %v2512 = vunpack.c.l.b16 %v2416
    %v2513 = vunpack.c.l.b16 %v2417
    %v2514 = vunpack.c.l.b16 %v2418
    %v2515 = vunpack.c.l.b16 %v2419
    %v2516 = vunpack.c.l.b16 %v2420
    %v2517 = vunpack.c.l.b16 %v2421
    %v2518 = vunpack.c.l.b16 %v2422
    %v2519 = vunpack.c.l.b16 %v2423
    %v2520 = vunpack.c.l.b16 %v2424
    %v2521 = vunpack.c.l.b16 %v2425
    %v2522 = vunpack.c.l.b16 %v2426
    %v2523 = vunpack.c.l.b16 %v2427
    %v2524 = vpack.c.b16 %v2493, %v2492
    %v2525 = vpack.c.b16 %v2495, %v2494
    %v2526 = vpack.c.b16 %v2497, %v2496
    %v2527 = vpack.c.b16 %v2499, %v2498
    %v2528 = vpack.c.b16 %v2501, %v2500
    %v2529 = vpack.c.b16 %v2503, %v2502
    %v2530 = vpack.c.b16 %v2505, %v2504
    %v2531 = vpack.c.b16 %v2507, %v2506
    %v2532 = vpack.c.b16 %v2509, %v2508
    %v2533 = vpack.c.b16 %v2511, %v2510
    %v2534 = vpack.c.b16 %v2513, %v2512
    %v2535 = vpack.c.b16 %v2515, %v2514
    %v2536 = vpack.c.b16 %v2517, %v2516
    %v2537 = vpack.c.b16 %v2519, %v2518
    %v2538 = vpack.c.b16 %v2521, %v2520
    %v2539 = vpack.c.b16 %v2523, %v2522
    %2556 = vmatprep.subr.bf16.mxu0 0
    %2557 = vmatpush1.bf16.msra.mxu0 %v2531
    %2558 = vmatprep.subr.bf16.mxu0 0
    %2559 = vmatpush1.bf16.msra.mxu0 %v2530
    %2560 = vmatprep.subr.bf16.mxu0 0
    %2561 = vmatpush1.bf16.msra.mxu0 %v2529
    %2562 = vmatprep.subr.bf16.mxu0 0
    %2563 = vmatpush1.bf16.msra.mxu0 %v2528
    %2564 = vmatprep.subr.bf16.mxu0 0
    %2565 = vmatpush1.bf16.msra.mxu0 %v2527
    %2566 = vmatprep.subr.bf16.mxu0 0
    %2567 = vmatpush1.bf16.msra.mxu0 %v2526
    %2568 = vmatprep.subr.bf16.mxu0 0
    %2569 = vmatpush1.bf16.msra.mxu0 %v2525
    %2570 = vmatprep.subr.bf16.mxu0 0
    %2571 = vmatpush1.bf16.msra.mxu0 %v2524
    %2572 = vmatprep.subr.bf16.mxu0 0
    %2573 = vmatpush2.bf16.msra.mxu0 %v2539
    %2574 = vmatprep.subr.bf16.mxu0 0
    %2575 = vmatpush2.bf16.msra.mxu0 %v2538
    %2576 = vmatprep.subr.bf16.mxu0 0
    %2577 = vmatpush2.bf16.msra.mxu0 %v2537
    %2578 = vmatprep.subr.bf16.mxu0 0
    %2579 = vmatpush2.bf16.msra.mxu0 %v2536
    %2580 = vmatprep.subr.bf16.mxu0 0
    %2581 = vmatpush2.bf16.msra.mxu0 %v2535
    %2582 = vmatprep.subr.bf16.mxu0 0
    %2583 = vmatpush2.bf16.msra.mxu0 %v2534
    %2584 = vmatprep.subr.bf16.mxu0 0
    %2585 = vmatpush2.bf16.msra.mxu0 %v2533
    %2586 = vmatprep.subr.bf16.mxu0 0
    %2587 = vmatpush2.bf16.msra.mxu0 %v2532
    %2588 = vmatprep.mubr.bf16.mxu0 %v2429
    %2589 = vmatmul.mubr.bf16.gmra.mxu0 %v2428
    %v2590 = vpop.f32.mrf.mxu0
    %v2591 = vadd.f32 0.0, %v2590
    %v2592 = vpop.f32.mrf.mxu0
    %v2593 = vpop.f32.mrf.mxu0
    %v2594 = vadd.f32 0.0, %v2593
    %v2595 = vpop.f32.mrf.mxu0
    %2596 = vmatprep.mubr.bf16.mxu0 %v2431
    %2597 = vmatmul.mubr.bf16.gmra.mxu0 %v2430
    %v2598 = vpop.f32.mrf.mxu0
    %v2599 = vadd.f32 0.0, %v2598
    %v2600 = vpop.f32.mrf.mxu0
    %v2601 = vpop.f32.mrf.mxu0
    %v2602 = vadd.f32 0.0, %v2601
    %v2603 = vpop.f32.mrf.mxu0
    %2604 = vmatprep.mubr.bf16.mxu0 %v2433
    %2605 = vmatmul.mubr.bf16.gmra.mxu0 %v2432
    %v2606 = vpop.f32.mrf.mxu0
    %v2607 = vadd.f32 0.0, %v2606
    %v2608 = vpop.f32.mrf.mxu0
    %v2609 = vpop.f32.mrf.mxu0
    %v2610 = vadd.f32 0.0, %v2609
    %v2611 = vpop.f32.mrf.mxu0
    %2612 = vmatprep.mubr.bf16.mxu0 %v2435
    %2613 = vmatmul.mubr.bf16.gmra.mxu0 %v2434
    %v2614 = vpop.f32.mrf.mxu0
    %v2615 = vadd.f32 0.0, %v2614
    %v2616 = vpop.f32.mrf.mxu0
    %v2617 = vpop.f32.mrf.mxu0
    %v2618 = vadd.f32 0.0, %v2617
    %v2619 = vpop.f32.mrf.mxu0
    %2620 = vmatprep.mubr.bf16.mxu0 %v2437
    %2621 = vmatmul.mubr.bf16.gmra.mxu0 %v2436
    %v2622 = vpop.f32.mrf.mxu0
    %v2623 = vadd.f32 0.0, %v2622
    %v2624 = vpop.f32.mrf.mxu0
    %v2625 = vpop.f32.mrf.mxu0
    %v2626 = vadd.f32 0.0, %v2625
    %v2627 = vpop.f32.mrf.mxu0
    %2628 = vmatprep.mubr.bf16.mxu0 %v2439
    %2629 = vmatmul.mubr.bf16.gmra.mxu0 %v2438
    %v2630 = vpop.f32.mrf.mxu0
    %v2631 = vadd.f32 0.0, %v2630
    %v2632 = vpop.f32.mrf.mxu0
    %v2633 = vpop.f32.mrf.mxu0
    %v2634 = vadd.f32 0.0, %v2633
    %v2635 = vpop.f32.mrf.mxu0
    %2636 = vmatprep.mubr.bf16.mxu0 %v2441
    %2637 = vmatmul.mubr.bf16.gmra.mxu0 %v2440
    %v2638 = vpop.f32.mrf.mxu0
    %v2639 = vadd.f32 0.0, %v2638
    %v2640 = vpop.f32.mrf.mxu0
    %v2641 = vpop.f32.mrf.mxu0
    %v2642 = vadd.f32 0.0, %v2641
    %v2643 = vpop.f32.mrf.mxu0
    %2644 = vmatprep.mubr.bf16.mxu0 %v2443
    %2645 = vmatmul.mubr.bf16.gmra.mxu0 %v2442
    %v2646 = vpop.f32.mrf.mxu0
    %v2647 = vadd.f32 0.0, %v2646
    %v2648 = vpop.f32.mrf.mxu0
    %v2649 = vpop.f32.mrf.mxu0
    %v2650 = vadd.f32 0.0, %v2649
    %v2651 = vpop.f32.mrf.mxu0
    %2652 = vmatprep.mubr.bf16.mxu0 %v2445
    %2653 = vmatmul.mubr.bf16.gmra.mxu0 %v2444
    %v2654 = vpop.f32.mrf.mxu0
    %v2655 = vadd.f32 0.0, %v2654
    %v2656 = vpop.f32.mrf.mxu0
    %v2657 = vpop.f32.mrf.mxu0
    %v2658 = vadd.f32 0.0, %v2657
    %v2659 = vpop.f32.mrf.mxu0
    %2660 = vmatprep.mubr.bf16.mxu0 %v2447
    %2661 = vmatmul.mubr.bf16.gmra.mxu0 %v2446
    %v2662 = vpop.f32.mrf.mxu0
    %v2663 = vadd.f32 0.0, %v2662
    %v2664 = vpop.f32.mrf.mxu0
    %v2665 = vpop.f32.mrf.mxu0
    %v2666 = vadd.f32 0.0, %v2665
    %v2667 = vpop.f32.mrf.mxu0
    %2668 = vmatprep.mubr.bf16.mxu0 %v2449
    %2669 = vmatmul.mubr.bf16.gmra.mxu0 %v2448
    %v2670 = vpop.f32.mrf.mxu0
    %v2671 = vadd.f32 0.0, %v2670
    %v2672 = vpop.f32.mrf.mxu0
    %v2673 = vpop.f32.mrf.mxu0
    %v2674 = vadd.f32 0.0, %v2673
    %v2675 = vpop.f32.mrf.mxu0
    %2676 = vmatprep.mubr.bf16.mxu0 %v2451
    %2677 = vmatmul.mubr.bf16.gmra.mxu0 %v2450
    %v2678 = vpop.f32.mrf.mxu0
    %v2679 = vadd.f32 0.0, %v2678
    %v2680 = vpop.f32.mrf.mxu0
    %v2681 = vpop.f32.mrf.mxu0
    %v2682 = vadd.f32 0.0, %v2681
    %v2683 = vpop.f32.mrf.mxu0
    %2684 = vmatprep.mubr.bf16.mxu0 %v2453
    %2685 = vmatmul.mubr.bf16.gmra.mxu0 %v2452
    %v2686 = vpop.f32.mrf.mxu0
    %v2687 = vadd.f32 0.0, %v2686
    %v2688 = vpop.f32.mrf.mxu0
    %v2689 = vpop.f32.mrf.mxu0
    %v2690 = vadd.f32 0.0, %v2689
    %v2691 = vpop.f32.mrf.mxu0
    %2692 = vmatprep.mubr.bf16.mxu0 %v2455
    %2693 = vmatmul.mubr.bf16.gmra.mxu0 %v2454
    %v2694 = vpop.f32.mrf.mxu0
    %v2695 = vadd.f32 0.0, %v2694
    %v2696 = vpop.f32.mrf.mxu0
    %v2697 = vpop.f32.mrf.mxu0
    %v2698 = vadd.f32 0.0, %v2697
    %v2699 = vpop.f32.mrf.mxu0
    %2700 = vmatprep.mubr.bf16.mxu0 %v2457
    %2701 = vmatmul.mubr.bf16.gmra.mxu0 %v2456
    %v2702 = vpop.f32.mrf.mxu0
    %v2703 = vadd.f32 0.0, %v2702
    %v2704 = vpop.f32.mrf.mxu0
    %v2705 = vpop.f32.mrf.mxu0
    %v2706 = vadd.f32 0.0, %v2705
    %v2707 = vpop.f32.mrf.mxu0
    %2708 = vmatprep.mubr.bf16.mxu0 %v2459
    %2709 = vmatmul.mubr.bf16.gmra.mxu0 %v2458
    %v2710 = vpop.f32.mrf.mxu0
    %v2711 = vadd.f32 0.0, %v2710
    %v2712 = vpop.f32.mrf.mxu0
    %v2713 = vpop.f32.mrf.mxu0
    %v2714 = vadd.f32 0.0, %v2713
    %v2715 = vpop.f32.mrf.mxu0
    %2716 = vdwg.mxu0
    %v2717 = vmul.f32 %v1179, %v1949
    %v2718 = vmul.f32 %v1182, %v1952
    %v2719 = vmul.f32 %v1187, %v1957
    %v2720 = vmul.f32 %v1190, %v1960
    %v2721 = vmul.f32 %v1195, %v1965
    %v2722 = vmul.f32 %v1198, %v1968
    %v2723 = vmul.f32 %v1203, %v1973
    %v2724 = vmul.f32 %v1206, %v1976
    %v2725 = vmul.f32 %v1211, %v1981
    %v2726 = vmul.f32 %v1214, %v1984
    %v2727 = vmul.f32 %v1219, %v1989
    %v2728 = vmul.f32 %v1222, %v1992
    %v2729 = vmul.f32 %v1227, %v1997
    %v2730 = vmul.f32 %v1230, %v2000
    %v2731 = vmul.f32 %v1235, %v2005
    %v2732 = vmul.f32 %v1238, %v2008
    %v2733 = vmul.f32 %v1243, %v2013
    %v2734 = vmul.f32 %v1246, %v2016
    %v2735 = vmul.f32 %v1251, %v2021
    %v2736 = vmul.f32 %v1254, %v2024
    %v2737 = vmul.f32 %v1259, %v2029
    %v2738 = vmul.f32 %v1262, %v2032
    %v2739 = vmul.f32 %v1267, %v2037
    %v2740 = vmul.f32 %v1270, %v2040
    %v2741 = vmul.f32 %v1275, %v2045
    %v2742 = vmul.f32 %v1278, %v2048
    %v2743 = vmul.f32 %v1283, %v2053
    %v2744 = vmul.f32 %v1286, %v2056
    %v2745 = vmul.f32 %v1291, %v2061
    %v2746 = vmul.f32 %v1294, %v2064
    %v2747 = vmul.f32 %v1299, %v2069
    %v2748 = vmul.f32 %v1302, %v2072
    %v2749 = vmul.f32 %v2717, %v2591
    %v2750 = vmul.f32 %v2718, %v2594
    %v2751 = vmul.f32 %v2719, %v2599
    %v2752 = vmul.f32 %v2720, %v2602
    %v2753 = vmul.f32 %v2721, %v2607
    %v2754 = vmul.f32 %v2722, %v2610
    %v2755 = vmul.f32 %v2723, %v2615
    %v2756 = vmul.f32 %v2724, %v2618
    %v2757 = vmul.f32 %v2725, %v2623
    %v2758 = vmul.f32 %v2726, %v2626
    %v2759 = vmul.f32 %v2727, %v2631
    %v2760 = vmul.f32 %v2728, %v2634
    %v2761 = vmul.f32 %v2729, %v2639
    %v2762 = vmul.f32 %v2730, %v2642
    %v2763 = vmul.f32 %v2731, %v2647
    %v2764 = vmul.f32 %v2732, %v2650
    %v2765 = vmul.f32 %v2733, %v2655
    %v2766 = vmul.f32 %v2734, %v2658
    %v2767 = vmul.f32 %v2735, %v2663
    %v2768 = vmul.f32 %v2736, %v2666
    %v2769 = vmul.f32 %v2737, %v2671
    %v2770 = vmul.f32 %v2738, %v2674
    %v2771 = vmul.f32 %v2739, %v2679
    %v2772 = vmul.f32 %v2740, %v2682
    %v2773 = vmul.f32 %v2741, %v2687
    %v2774 = vmul.f32 %v2742, %v2690
    %v2775 = vmul.f32 %v2743, %v2695
    %v2776 = vmul.f32 %v2744, %v2698
    %v2777 = vmul.f32 %v2745, %v2703
    %v2778 = vmul.f32 %v2746, %v2706
    %v2779 = vmul.f32 %v2747, %v2711
    %v2780 = vmul.f32 %v2748, %v2714
    %2789 = vrot.lane.b32.xlu0 %v2757, 32
    %v2790 = vpop.permute.xlu0 %2789
    %2791 = vrot.lane.b32.xlu0 %v2758, 32
    %v2792 = vpop.permute.xlu0 %2791
    %2793 = vrot.lane.b32.xlu0 %v2759, 32
    %v2794 = vpop.permute.xlu0 %2793
    %2795 = vrot.lane.b32.xlu0 %v2760, 32
    %v2796 = vpop.permute.xlu0 %2795
    %2797 = vrot.lane.b32.xlu0 %v2761, 32
    %v2798 = vpop.permute.xlu0 %2797
    %2799 = vrot.lane.b32.xlu0 %v2762, 32
    %v2800 = vpop.permute.xlu0 %2799
    %2801 = vrot.lane.b32.xlu0 %v2763, 32
    %v2802 = vpop.permute.xlu0 %2801
    %2803 = vrot.lane.b32.xlu0 %v2764, 32
    %v2804 = vpop.permute.xlu0 %2803
    %2821 = vrot.lane.b32.xlu0 %v2765, 64
    %v2822 = vpop.permute.xlu0 %2821
    %2823 = vrot.lane.b32.xlu0 %v2766, 64
    %v2824 = vpop.permute.xlu0 %2823
    %2825 = vrot.lane.b32.xlu0 %v2767, 64
    %v2826 = vpop.permute.xlu0 %2825
    %2827 = vrot.lane.b32.xlu0 %v2768, 64
    %v2828 = vpop.permute.xlu0 %2827
    %2829 = vrot.lane.b32.xlu0 %v2769, 64
    %v2830 = vpop.permute.xlu0 %2829
    %2831 = vrot.lane.b32.xlu0 %v2770, 64
    %v2832 = vpop.permute.xlu0 %2831
    %2833 = vrot.lane.b32.xlu0 %v2771, 64
    %v2834 = vpop.permute.xlu0 %2833
    %2835 = vrot.lane.b32.xlu0 %v2772, 64
    %v2836 = vpop.permute.xlu0 %2835
    %2853 = vrot.lane.b32.xlu0 %v2773, 96
    %v2854 = vpop.permute.xlu0 %2853
    %2855 = vrot.lane.b32.xlu0 %v2774, 96
    %v2856 = vpop.permute.xlu0 %2855
    %2857 = vrot.lane.b32.xlu0 %v2775, 96
    %v2858 = vpop.permute.xlu0 %2857
    %2859 = vrot.lane.b32.xlu0 %v2776, 96
    %v2860 = vpop.permute.xlu0 %2859
    %2861 = vrot.lane.b32.xlu0 %v2777, 96
    %v2862 = vpop.permute.xlu0 %2861
    %2863 = vrot.lane.b32.xlu0 %v2778, 96
    %v2864 = vpop.permute.xlu0 %2863
    %2865 = vrot.lane.b32.xlu0 %v2779, 96
    %v2866 = vpop.permute.xlu0 %2865
    %2867 = vrot.lane.b32.xlu0 %v2780, 96
    %v2868 = vpop.permute.xlu0 %2867
    %vm2877 = vcmask 261120
    %v2878 = vsel %vm2877, %v2749, %v2790
    %v2879 = vsel %vm2877, %v2750, %v2792
    %v2880 = vsel %vm2877, %v2751, %v2794
    %v2881 = vsel %vm2877, %v2752, %v2796
    %v2882 = vsel %vm2877, %v2753, %v2798
    %v2883 = vsel %vm2877, %v2754, %v2800
    %v2884 = vsel %vm2877, %v2755, %v2802
    %v2885 = vsel %vm2877, %v2756, %v2804
    %vm2886 = vcmask 523264
    %v2887 = vsel %vm2886, %v2878, %v2822
    %v2888 = vsel %vm2886, %v2879, %v2824
    %v2889 = vsel %vm2886, %v2880, %v2826
    %v2890 = vsel %vm2886, %v2881, %v2828
    %v2891 = vsel %vm2886, %v2882, %v2830
    %v2892 = vsel %vm2886, %v2883, %v2832
    %v2893 = vsel %vm2886, %v2884, %v2834
    %v2894 = vsel %vm2886, %v2885, %v2836
    %vm2895 = vcmask 785408
    %v2896 = vsel %vm2895, %v2887, %v2854
    %v2897 = vsel %vm2895, %v2888, %v2856
    %v2898 = vsel %vm2895, %v2889, %v2858
    %v2899 = vsel %vm2895, %v2890, %v2860
    %v2900 = vsel %vm2895, %v2891, %v2862
    %v2901 = vsel %vm2895, %v2892, %v2864
    %v2902 = vsel %vm2895, %v2893, %v2866
    %v2903 = vsel %vm2895, %v2894, %v2868
    %2904 = vst [vmem:[#allocation2] sm:$0xff] %v2896
    %2905 = vst [vmem:[#allocation2 + $0x8] sm:$0xff] %v2897
    %2906 = vst [vmem:[#allocation2 + $0x10] sm:$0xff] %v2898
    %2907 = vst [vmem:[#allocation2 + $0x18] sm:$0xff] %v2899
    %2908 = vst [vmem:[#allocation2 + $0x20] sm:$0xff] %v2900
    %2909 = vst [vmem:[#allocation2 + $0x28] sm:$0xff] %v2901
    %2910 = vst [vmem:[#allocation2 + $0x30] sm:$0xff] %v2902
    %2911 = vst [vmem:[#allocation2 + $0x38] sm:$0xff] %v2903
    // Predicated region
    $region10: #{tpu_custom_call.1} parent=1 // pred_check
      _
    $region11: #{tpu_custom_call.1} parent=1 // pred_check_branch
      %2913 = sbr.rel (0) target = $region13
    $region12: #{tpu_custom_call.1} parent=1 // pred_region
      %s2915 = ssub.s32 1024, 1024
      %2916 = vsyncadd [#allocation3], %s2915
      %s2917 = sshll.u32 [#allocation2], 4
      %s2918 = int_to_ptr.vmem [resolvable:$true] %s2917
      %2923 = dma.vmem_to_hbm [thread:$0]  %s2918, 1024, %s2, [#allocation3], 128, 128, 8
    $region13: #{tpu_custom_call.1} parent=1 // pred_fallthru
      _
    // Predicated region
    $region14: #{tpu_custom_call.1} parent=1 // pred_check
      _
    $region15: #{tpu_custom_call.1} parent=1 // pred_check_branch
      %2925 = sbr.rel (0) target = $region17
    $region16: #{tpu_custom_call.1} parent=1 // pred_region
      %2926 = dma.done [#allocation3], 1024
    $region17: #{tpu_custom_call.1} parent=1 // pred_fallthru
      _
    %2927 = vsyncpa [#allocation3], 1

</llo_original>
